<compile_context>
chip_gen: v6e
topology: v6e:2x2x1
jax: 0.10.0
libtpu: 0.0.40
codegen_flags: <defaults>
</compile_context>

<pallas_src>
import functools

import jax
import jax.numpy as jnp
import numpy as np
from jax import lax
from jax.experimental import pallas as pl
from jax.experimental.pallas import tpu as pltpu


def _lstm_recurrence_kernel(*refs, hidden, chunk_len, unroll, with_init):
    """Sequential LSTM recurrence over one time chunk of one direction.

    Grid: (num_dir, num_chunks) with ("parallel", "arbitrary") semantics.

    refs (in order):
      gx_ref  : (1, Tc, B, 4H) f32   precomputed x @ W_ih^T + b for this chunk
      whh_ref : (1, H, 4H)           recurrent weights (VMEM resident)
      [h0_ref : (1, B, H)]           only if with_init
      [c0_ref : (1, B, H)]           only if with_init
      out_ref : (1, Tc, B, H)
      h_scr, c_scr : (B, H) f32      state carried across chunks
    """
    if with_init:
        gx_ref, whh_ref, h0_ref, c0_ref, out_ref, h_scr, c_scr = refs
    else:
        gx_ref, whh_ref, out_ref, h_scr, c_scr = refs

    d = pl.program_id(0)        # direction: 0 = forward, 1 = backward
    c = pl.program_id(1)        # time-chunk index (sequential)

    @pl.when(c == 0)
    def _():
        if with_init:
            h_scr[...] = h0_ref[0].astype(jnp.float32)
            c_scr[...] = c0_ref[0].astype(jnp.float32)
        else:
            h_scr[...] = jnp.zeros_like(h_scr)
            c_scr[...] = jnp.zeros_like(c_scr)

    H = hidden
    whh = whh_ref[0]            # (H, 4H), model dtype -> native MXU path

    def step(t, carry):
        h_prev, c_prev = carry
        # forward walks t = 0..Tc-1; backward walks Tc-1..0 within the chunk
        t_eff = d * (chunk_len - 1) + (1 - 2 * d) * t
        gx = gx_ref[0, t_eff]                                     # (B, 4H) f32
        gates = gx + jnp.dot(h_prev.astype(whh.dtype), whh,
                             preferred_element_type=jnp.float32)  # (B, 4H) f32
        # Two full-width EUP pushes (sigmoid + tanh over 4H lanes), then slice.
        sig = jax.nn.sigmoid(gates)
        tnh = jnp.tanh(gates)
        i_g = sig[:, 0 * H:1 * H]
        f_g = sig[:, 1 * H:2 * H]
        g_g = tnh[:, 2 * H:3 * H]
        o_g = sig[:, 3 * H:4 * H]
        c_new = f_g * c_prev + i_g * g_g
        h_new = o_g * jnp.tanh(c_new)
        out_ref[0, t_eff] = h_new.astype(out_ref.dtype)
        return h_new, c_new

    h_fin, c_fin = lax.fori_loop(0, chunk_len, step,
                                 (h_scr[...], c_scr[...]), unroll=unroll)
    h_scr[...] = h_fin
    c_scr[...] = c_fin


def _pick_chunk(seq_len):
    for cand in (512, 256, 128):
        if seq_len > cand and seq_len % cand == 0:
            return cand
    return seq_len


def _lstm_layer_recurrence(gates_x, w_hhT, h0=None, c0=None, *, out_dtype):
    """gates_x: (D, S, B, 4H) f32;  w_hhT: (D, H, 4H).  Returns (D, S, B, H)."""
    D, S, B, G = gates_x.shape
    H = G // 4
    Tc = _pick_chunk(S)
    C = S // Tc
    unroll = next(u for u in (8, 4, 2, 1) if Tc % u == 0)
    with_init = h0 is not None

    # Direction-aware time-block index: fwd walks chunks 0..C-1, bwd C-1..0.
    def time_block(d, c):
        return (d, d * (C - 1) + (1 - 2 * d) * c, 0, 0)

    in_specs = [
        pl.BlockSpec((1, Tc, B, G), time_block),            # gate pre-acts
        pl.BlockSpec((1, H, G), lambda d, c: (d, 0, 0)),    # W_hh^T, resident
    ]
    args = [gates_x, w_hhT]
    if with_init:
        in_specs += [pl.BlockSpec((1, B, H), lambda d, c: (d, 0, 0)),
                     pl.BlockSpec((1, B, H), lambda d, c: (d, 0, 0))]
        args += [h0, c0]

    kernel = functools.partial(_lstm_recurrence_kernel, hidden=H,
                               chunk_len=Tc, unroll=unroll,
                               with_init=with_init)

    cost = pl.CostEstimate(
        flops=2 * D * S * B * H * G,
        transcendentals=D * S * B * (2 * G + H),
        bytes_accessed=(gates_x.size * 4
                        + w_hhT.size * w_hhT.dtype.itemsize
                        + D * S * B * H * jnp.dtype(out_dtype).itemsize),
    )

    return pl.pallas_call(
        kernel,
        out_shape=jax.ShapeDtypeStruct((D, S, B, H), out_dtype),
        grid=(D, C),
        in_specs=in_specs,
        out_specs=pl.BlockSpec((1, Tc, B, H), time_block),
        scratch_shapes=[pltpu.VMEM((B, H), jnp.float32),    # h state
                        pltpu.VMEM((B, H), jnp.float32)],   # c state
        compiler_params=pltpu.CompilerParams(
            dimension_semantics=("parallel", "arbitrary")),
        cost_estimate=cost,
    )(*args)


@functools.partial(jax.jit, static_argnames=("num_layers", "bidirectional"))
def lstm_forward(x, layer_params, *, num_layers, bidirectional,
                 hn=None, cn=None):
    """PyTorch-style nn.LSTM forward (batch_first=True); returns `out` only.

    x: (B, S, input_size)
    layer_params[l] = (w_ihT, w_hhT, bias) stacked over directions:
        w_ihT: (D, in_l, 4H)   w_hhT: (D, H, 4H)   bias: (D, 4H) = b_ih + b_hh
    """
    B, S, _ = x.shape
    D = 2 if bidirectional else 1

    # Time-major with a leading "feature group" axis; upper bidirectional
    # layers never materialise the fwd/bwd concat in HBM.
    layer_in = jnp.transpose(x, (1, 0, 2))[None]             # (1, S, B, I)

    H = None
    for layer in range(num_layers):
        w_ihT, w_hhT, bias = layer_params[layer]
        G = w_ihT.shape[-1]
        H = G // 4
        Din, _, _, Fin = layer_in.shape
        w = w_ihT.reshape(D, Din, Fin, G)
        # Input projection hoisted out of the recurrence: one big matmul.
        gates_x = jnp.einsum("dsbf,edfg->esbg", layer_in, w,
                             preferred_element_type=jnp.float32)
        gates_x = gates_x + bias[:, None, None, :].astype(jnp.float32)

        h0 = c0 = None
        if hn is not None or cn is not None:
            h0 = (hn[layer * D:(layer + 1) * D] if hn is not None
                  else jnp.zeros((D, B, H), x.dtype))
            c0 = (cn[layer * D:(layer + 1) * D] if cn is not None
                  else jnp.zeros((D, B, H), x.dtype))

        layer_in = _lstm_layer_recurrence(gates_x, w_hhT, h0, c0,
                                          out_dtype=x.dtype)
        # TODO(synk): train-mode inter-layer dropout not applied (inference).

    # (D, S, B, H) -> (B, S, D*H) to match batch_first PyTorch layout.
    return jnp.transpose(layer_in, (2, 1, 0, 3)).reshape(B, S, D * H)


if __name__ == "__main__":
    # Small shapes consistent with the module: batch=2, seq=8, input_size=32,
    # hidden_size=32, num_layers=2, bidirectional=True, dropout=0 (inference).
    B, S, I, H = 2, 8, 32, 32
    num_layers, bidirectional = 2, True
    D = 2 if bidirectional else 1

    key = jax.random.PRNGKey(0)
    key, xk = jax.random.split(key)
    x = jax.random.normal(xk, (B, S, I), dtype=jnp.float32)

    bound = 1.0 / np.sqrt(H)
    layer_params = []
    per_dir_params = {}          # for the numpy reference
    for layer in range(num_layers):
        in_size = I if layer == 0 else H * D
        w_ihTs, w_hhTs, biases = [], [], []
        for d in range(D):
            key, k1, k2, k3, k4 = jax.random.split(key, 5)
            w_ih = jax.random.uniform(k1, (4 * H, in_size), jnp.float32, -bound, bound)
            w_hh = jax.random.uniform(k2, (4 * H, H), jnp.float32, -bound, bound)
            b_ih = jax.random.uniform(k3, (4 * H,), jnp.float32, -bound, bound)
            b_hh = jax.random.uniform(k4, (4 * H,), jnp.float32, -bound, bound)
            w_ihTs.append(jnp.transpose(w_ih))        # (in, 4H)
            w_hhTs.append(jnp.transpose(w_hh))        # (H, 4H)
            biases.append(b_ih + b_hh)                # (4H,)
            per_dir_params[(layer, d)] = (np.asarray(jnp.transpose(w_ih)),
                                          np.asarray(jnp.transpose(w_hh)),
                                          np.asarray(b_ih + b_hh))
        layer_params.append((jnp.stack(w_ihTs), jnp.stack(w_hhTs),
                             jnp.stack(biases)))

    out = lstm_forward(x, layer_params, num_layers=num_layers,
                       bidirectional=bidirectional)
    out = jax.block_until_ready(out)
    assert out.shape == (B, S, D * H), out.shape

    # --------- Pure-numpy reference (mirrors nn.LSTM, batch_first=True) -----
    def _sigmoid(z):
        return 1.0 / (1.0 + np.exp(-z))

    def lstm_ref(x_np, params, num_layers, bidirectional):
        x_np = np.asarray(x_np, np.float32)
        Bn, Sn, _ = x_np.shape
        nd = 2 if bidirectional else 1
        h_in = x_np
        for layer in range(num_layers):
            outs = []
            for d in range(nd):
                w_ihT, w_hhT, bias = (np.asarray(a, np.float32)
                                      for a in params[(layer, d)])
                Hn = w_hhT.shape[0]
                seq = h_in if d == 0 else h_in[:, ::-1]
                h = np.zeros((Bn, Hn), np.float32)
                c = np.zeros((Bn, Hn), np.float32)
                ys = []
                for t in range(Sn):
                    g = seq[:, t] @ w_ihT + h @ w_hhT + bias
                    i_g = _sigmoid(g[:, 0 * Hn:1 * Hn])
                    f_g = _sigmoid(g[:, 1 * Hn:2 * Hn])
                    g_g = np.tanh(g[:, 2 * Hn:3 * Hn])
                    o_g = _sigmoid(g[:, 3 * Hn:4 * Hn])
                    c = f_g * c + i_g * g_g
                    h = o_g * np.tanh(c)
                    ys.append(h)
                y = np.stack(ys, axis=1)
                if d == 1:
                    y = y[:, ::-1]
                outs.append(y)
            h_in = outs[0] if nd == 1 else np.concatenate(outs, axis=-1)
        return h_in

    ref = lstm_ref(np.asarray(x), per_dir_params, num_layers, bidirectional)
    np.testing.assert_allclose(np.asarray(out), ref, rtol=2e-2, atol=2e-2)
    print("KERNEL_OK")
</pallas_src>

<mosaic_0001>
module attributes {stable_mosaic.version = 11 : i64} {
  func.func @_lstm_recurrence_kernel(%arg0: i32, %arg1: i32, %arg2: memref<1x8x2x128xf32, #tpu.memory_space<vmem>>, %arg3: memref<1x32x128xf32, #tpu.memory_space<vmem>>, %arg4: memref<1x8x2x32xf32, #tpu.memory_space<vmem>>, %arg5: memref<2x32xf32, #tpu.memory_space<vmem>>, %arg6: memref<2x32xf32, #tpu.memory_space<vmem>>) attributes {dimension_semantics = [#tpu.dimension_semantics<parallel>, #tpu.dimension_semantics<arbitrary>], iteration_bounds = array<i64: 2, 1>, scalar_prefetch = 0 : i64, scratch_operands = 2 : i64, tpu.core_type = #tpu.core_type<tc>, window_params = [{transform_indices = @transform_0, window_bounds = array<i64: 1, 8, 2, 128>}, {transform_indices = @transform_1, window_bounds = array<i64: 1, 32, 128>}, {transform_indices = @transform_2, window_bounds = array<i64: 1, 8, 2, 32>}]} {
    %c0_i32 = arith.constant 0 : i32
    %0 = arith.cmpi eq, %arg1, %c0_i32 : i32
    %1 = arith.extui %0 : i1 to i32
    %c0_i32_0 = arith.constant 0 : i32
    %2 = arith.cmpi ne, %1, %c0_i32_0 : i32
    scf.if %2 {
      %cst_99 = arith.constant 0.000000e+00 : f32
      %241 = vector.broadcast %cst_99 : f32 to vector<2x32xf32>
      %c0_100 = arith.constant 0 : index
      %c0_101 = arith.constant 0 : index
      %242 = vector.load %arg5[%c0_100, %c0_101] : memref<2x32xf32, #tpu.memory_space<vmem>>, vector<2x32xf32>
      tpu.vector_store %arg5[%c0_100, %c0_101], %241 {strides = array<i32>} : memref<2x32xf32, #tpu.memory_space<vmem>>, vector<2x32xf32>,
      %cst_102 = arith.constant 0.000000e+00 : f32
      %243 = vector.broadcast %cst_102 : f32 to vector<2x32xf32>
      %c0_103 = arith.constant 0 : index
      %c0_104 = arith.constant 0 : index
      %244 = vector.load %arg6[%c0_103, %c0_104] : memref<2x32xf32, #tpu.memory_space<vmem>>, vector<2x32xf32>
      tpu.vector_store %arg6[%c0_103, %c0_104], %243 {strides = array<i32>} : memref<2x32xf32, #tpu.memory_space<vmem>>, vector<2x32xf32>,
    } else {
    }
    %c0 = arith.constant 0 : index
    %c0_1 = arith.constant 0 : index
    %c0_2 = arith.constant 0 : index
    %3 = vector.load %arg3[%c0, %c0_1, %c0_2] : memref<1x32x128xf32, #tpu.memory_space<vmem>>, vector<1x32x128xf32>
    %4 = vector.shape_cast %3 : vector<1x32x128xf32> to vector<32x128xf32>
    %c0_3 = arith.constant 0 : index
    %c0_4 = arith.constant 0 : index
    %5 = vector.load %arg5[%c0_3, %c0_4] : memref<2x32xf32, #tpu.memory_space<vmem>>, vector<2x32xf32>
    %c0_5 = arith.constant 0 : index
    %c0_6 = arith.constant 0 : index
    %6 = vector.load %arg6[%c0_5, %c0_6] : memref<2x32xf32, #tpu.memory_space<vmem>>, vector<2x32xf32>
    %c0_i32_7 = arith.constant 0 : i32
    %c7_i32 = arith.constant 7 : i32
    %7 = arith.muli %arg0, %c7_i32 : i32
    %c2_i32 = arith.constant 2 : i32
    %8 = arith.muli %c2_i32, %arg0 : i32
    %c1_i32 = arith.constant 1 : i32
    %9 = arith.subi %c1_i32, %8 : i32
    %10 = arith.muli %9, %c0_i32_7 : i32
    %11 = arith.addi %7, %10 : i32
    %c0_8 = arith.constant 0 : index
    %12 = arith.index_cast %11 : i32 to index
    %c0_9 = arith.constant 0 : index
    %c0_10 = arith.constant 0 : index
    %13 = vector.load %arg2[%c0_8, %12, %c0_9, %c0_10] : memref<1x8x2x128xf32, #tpu.memory_space<vmem>>, vector<1x1x2x128xf32>
    %14 = vector.shape_cast %13 : vector<1x1x2x128xf32> to vector<2x128xf32>
    %cst = arith.constant dense<0.000000e+00> : vector<2x128xf32>
    %15 = tpu.matmul %5, %4, %cst {dimension_numbers = #tpu.dot_dimension_numbers<[1], [0], [0], [1], [0, 0, 1, 1], [], []>} : vector<2x32xf32>, vector<32x128xf32>, vector<2x128xf32> -> vector<2x128xf32>
    %16 = arith.addf %14, %15 : vector<2x128xf32>
    %17 = arith.negf %16 : vector<2x128xf32>
    %18 = math.exp %17 : vector<2x128xf32>
    %cst_11 = arith.constant 1.000000e+00 : f32
    %19 = vector.broadcast %cst_11 : f32 to vector<2x128xf32>
    %20 = arith.addf %19, %18 : vector<2x128xf32>
    %21 = arith.divf %19, %20 : vector<2x128xf32>
    %22 = math.tanh %16 : vector<2x128xf32>
    %23 = vector.extract_strided_slice %21 {offsets = [0, 0], sizes = [2, 32], strides = [1, 1]} : vector<2x128xf32> to vector<2x32xf32>
    %24 = vector.extract_strided_slice %21 {offsets = [0, 32], sizes = [2, 32], strides = [1, 1]} : vector<2x128xf32> to vector<2x32xf32>
    %25 = vector.extract_strided_slice %22 {offsets = [0, 64], sizes = [2, 32], strides = [1, 1]} : vector<2x128xf32> to vector<2x32xf32>
    %26 = vector.extract_strided_slice %21 {offsets = [0, 96], sizes = [2, 32], strides = [1, 1]} : vector<2x128xf32> to vector<2x32xf32>
    %27 = arith.mulf %24, %6 : vector<2x32xf32>
    %28 = arith.mulf %23, %25 : vector<2x32xf32>
    %29 = arith.addf %27, %28 : vector<2x32xf32>
    %30 = math.tanh %29 : vector<2x32xf32>
    %31 = arith.mulf %26, %30 : vector<2x32xf32>
    %c0_12 = arith.constant 0 : index
    %32 = arith.index_cast %11 : i32 to index
    %c0_13 = arith.constant 0 : index
    %c0_14 = arith.constant 0 : index
    %33 = vector.load %arg4[%c0_12, %32, %c0_13, %c0_14] : memref<1x8x2x32xf32, #tpu.memory_space<vmem>>, vector<1x1x2x32xf32>
    %34 = vector.shape_cast %33 : vector<1x1x2x32xf32> to vector<2x32xf32>
    %35 = vector.shape_cast %31 : vector<2x32xf32> to vector<1x1x2x32xf32>
    tpu.vector_store %arg4[%c0_12, %32, %c0_13, %c0_14], %35 {strides = array<i32>} : memref<1x8x2x32xf32, #tpu.memory_space<vmem>>, vector<1x1x2x32xf32>,
    %c1_i32_15 = arith.constant 1 : i32
    %c7_i32_16 = arith.constant 7 : i32
    %36 = arith.muli %arg0, %c7_i32_16 : i32
    %c2_i32_17 = arith.constant 2 : i32
    %37 = arith.muli %c2_i32_17, %arg0 : i32
    %c1_i32_18 = arith.constant 1 : i32
    %38 = arith.subi %c1_i32_18, %37 : i32
    %39 = arith.muli %38, %c1_i32_15 : i32
    %40 = arith.addi %36, %39 : i32
    %c0_19 = arith.constant 0 : index
    %41 = arith.index_cast %40 : i32 to index
    %c0_20 = arith.constant 0 : index
    %c0_21 = arith.constant 0 : index
    %42 = vector.load %arg2[%c0_19, %41, %c0_20, %c0_21] : memref<1x8x2x128xf32, #tpu.memory_space<vmem>>, vector<1x1x2x128xf32>
    %43 = vector.shape_cast %42 : vector<1x1x2x128xf32> to vector<2x128xf32>
    %cst_22 = arith.constant dense<0.000000e+00> : vector<2x128xf32>
    %44 = tpu.matmul %31, %4, %cst_22 {dimension_numbers = #tpu.dot_dimension_numbers<[1], [0], [0], [1], [0, 0, 1, 1], [], []>} : vector<2x32xf32>, vector<32x128xf32>, vector<2x128xf32> -> vector<2x128xf32>
    %45 = arith.addf %43, %44 : vector<2x128xf32>
    %46 = arith.negf %45 : vector<2x128xf32>
    %47 = math.exp %46 : vector<2x128xf32>
    %cst_23 = arith.constant 1.000000e+00 : f32
    %48 = vector.broadcast %cst_23 : f32 to vector<2x128xf32>
    %49 = arith.addf %48, %47 : vector<2x128xf32>
    %50 = arith.divf %48, %49 : vector<2x128xf32>
    %51 = math.tanh %45 : vector<2x128xf32>
    %52 = vector.extract_strided_slice %50 {offsets = [0, 0], sizes = [2, 32], strides = [1, 1]} : vector<2x128xf32> to vector<2x32xf32>
    %53 = vector.extract_strided_slice %50 {offsets = [0, 32], sizes = [2, 32], strides = [1, 1]} : vector<2x128xf32> to vector<2x32xf32>
    %54 = vector.extract_strided_slice %51 {offsets = [0, 64], sizes = [2, 32], strides = [1, 1]} : vector<2x128xf32> to vector<2x32xf32>
    %55 = vector.extract_strided_slice %50 {offsets = [0, 96], sizes = [2, 32], strides = [1, 1]} : vector<2x128xf32> to vector<2x32xf32>
    %56 = arith.mulf %53, %29 : vector<2x32xf32>
    %57 = arith.mulf %52, %54 : vector<2x32xf32>
    %58 = arith.addf %56, %57 : vector<2x32xf32>
    %59 = math.tanh %58 : vector<2x32xf32>
    %60 = arith.mulf %55, %59 : vector<2x32xf32>
    %c0_24 = arith.constant 0 : index
    %61 = arith.index_cast %40 : i32 to index
    %c0_25 = arith.constant 0 : index
    %c0_26 = arith.constant 0 : index
    %62 = vector.load %arg4[%c0_24, %61, %c0_25, %c0_26] : memref<1x8x2x32xf32, #tpu.memory_space<vmem>>, vector<1x1x2x32xf32>
    %63 = vector.shape_cast %62 : vector<1x1x2x32xf32> to vector<2x32xf32>
    %64 = vector.shape_cast %60 : vector<2x32xf32> to vector<1x1x2x32xf32>
    tpu.vector_store %arg4[%c0_24, %61, %c0_25, %c0_26], %64 {strides = array<i32>} : memref<1x8x2x32xf32, #tpu.memory_space<vmem>>, vector<1x1x2x32xf32>,
    %c2_i32_27 = arith.constant 2 : i32
    %c7_i32_28 = arith.constant 7 : i32
    %65 = arith.muli %arg0, %c7_i32_28 : i32
    %c2_i32_29 = arith.constant 2 : i32
    %66 = arith.muli %c2_i32_29, %arg0 : i32
    %c1_i32_30 = arith.constant 1 : i32
    %67 = arith.subi %c1_i32_30, %66 : i32
    %68 = arith.muli %67, %c2_i32_27 : i32
    %69 = arith.addi %65, %68 : i32
    %c0_31 = arith.constant 0 : index
    %70 = arith.index_cast %69 : i32 to index
    %c0_32 = arith.constant 0 : index
    %c0_33 = arith.constant 0 : index
    %71 = vector.load %arg2[%c0_31, %70, %c0_32, %c0_33] : memref<1x8x2x128xf32, #tpu.memory_space<vmem>>, vector<1x1x2x128xf32>
    %72 = vector.shape_cast %71 : vector<1x1x2x128xf32> to vector<2x128xf32>
    %cst_34 = arith.constant dense<0.000000e+00> : vector<2x128xf32>
    %73 = tpu.matmul %60, %4, %cst_34 {dimension_numbers = #tpu.dot_dimension_numbers<[1], [0], [0], [1], [0, 0, 1, 1], [], []>} : vector<2x32xf32>, vector<32x128xf32>, vector<2x128xf32> -> vector<2x128xf32>
    %74 = arith.addf %72, %73 : vector<2x128xf32>
    %75 = arith.negf %74 : vector<2x128xf32>
    %76 = math.exp %75 : vector<2x128xf32>
    %cst_35 = arith.constant 1.000000e+00 : f32
    %77 = vector.broadcast %cst_35 : f32 to vector<2x128xf32>
    %78 = arith.addf %77, %76 : vector<2x128xf32>
    %79 = arith.divf %77, %78 : vector<2x128xf32>
    %80 = math.tanh %74 : vector<2x128xf32>
    %81 = vector.extract_strided_slice %79 {offsets = [0, 0], sizes = [2, 32], strides = [1, 1]} : vector<2x128xf32> to vector<2x32xf32>
    %82 = vector.extract_strided_slice %79 {offsets = [0, 32], sizes = [2, 32], strides = [1, 1]} : vector<2x128xf32> to vector<2x32xf32>
    %83 = vector.extract_strided_slice %80 {offsets = [0, 64], sizes = [2, 32], strides = [1, 1]} : vector<2x128xf32> to vector<2x32xf32>
    %84 = vector.extract_strided_slice %79 {offsets = [0, 96], sizes = [2, 32], strides = [1, 1]} : vector<2x128xf32> to vector<2x32xf32>
    %85 = arith.mulf %82, %58 : vector<2x32xf32>
    %86 = arith.mulf %81, %83 : vector<2x32xf32>
    %87 = arith.addf %85, %86 : vector<2x32xf32>
    %88 = math.tanh %87 : vector<2x32xf32>
    %89 = arith.mulf %84, %88 : vector<2x32xf32>
    %c0_36 = arith.constant 0 : index
    %90 = arith.index_cast %69 : i32 to index
    %c0_37 = arith.constant 0 : index
    %c0_38 = arith.constant 0 : index
    %91 = vector.load %arg4[%c0_36, %90, %c0_37, %c0_38] : memref<1x8x2x32xf32, #tpu.memory_space<vmem>>, vector<1x1x2x32xf32>
    %92 = vector.shape_cast %91 : vector<1x1x2x32xf32> to vector<2x32xf32>
    %93 = vector.shape_cast %89 : vector<2x32xf32> to vector<1x1x2x32xf32>
    tpu.vector_store %arg4[%c0_36, %90, %c0_37, %c0_38], %93 {strides = array<i32>} : memref<1x8x2x32xf32, #tpu.memory_space<vmem>>, vector<1x1x2x32xf32>,
    %c3_i32 = arith.constant 3 : i32
    %c7_i32_39 = arith.constant 7 : i32
    %94 = arith.muli %arg0, %c7_i32_39 : i32
    %c2_i32_40 = arith.constant 2 : i32
    %95 = arith.muli %c2_i32_40, %arg0 : i32
    %c1_i32_41 = arith.constant 1 : i32
    %96 = arith.subi %c1_i32_41, %95 : i32
    %97 = arith.muli %96, %c3_i32 : i32
    %98 = arith.addi %94, %97 : i32
    %c0_42 = arith.constant 0 : index
    %99 = arith.index_cast %98 : i32 to index
    %c0_43 = arith.constant 0 : index
    %c0_44 = arith.constant 0 : index
    %100 = vector.load %arg2[%c0_42, %99, %c0_43, %c0_44] : memref<1x8x2x128xf32, #tpu.memory_space<vmem>>, vector<1x1x2x128xf32>
    %101 = vector.shape_cast %100 : vector<1x1x2x128xf32> to vector<2x128xf32>
    %cst_45 = arith.constant dense<0.000000e+00> : vector<2x128xf32>
    %102 = tpu.matmul %89, %4, %cst_45 {dimension_numbers = #tpu.dot_dimension_numbers<[1], [0], [0], [1], [0, 0, 1, 1], [], []>} : vector<2x32xf32>, vector<32x128xf32>, vector<2x128xf32> -> vector<2x128xf32>
    %103 = arith.addf %101, %102 : vector<2x128xf32>
    %104 = arith.negf %103 : vector<2x128xf32>
    %105 = math.exp %104 : vector<2x128xf32>
    %cst_46 = arith.constant 1.000000e+00 : f32
    %106 = vector.broadcast %cst_46 : f32 to vector<2x128xf32>
    %107 = arith.addf %106, %105 : vector<2x128xf32>
    %108 = arith.divf %106, %107 : vector<2x128xf32>
    %109 = math.tanh %103 : vector<2x128xf32>
    %110 = vector.extract_strided_slice %108 {offsets = [0, 0], sizes = [2, 32], strides = [1, 1]} : vector<2x128xf32> to vector<2x32xf32>
    %111 = vector.extract_strided_slice %108 {offsets = [0, 32], sizes = [2, 32], strides = [1, 1]} : vector<2x128xf32> to vector<2x32xf32>
    %112 = vector.extract_strided_slice %109 {offsets = [0, 64], sizes = [2, 32], strides = [1, 1]} : vector<2x128xf32> to vector<2x32xf32>
    %113 = vector.extract_strided_slice %108 {offsets = [0, 96], sizes = [2, 32], strides = [1, 1]} : vector<2x128xf32> to vector<2x32xf32>
    %114 = arith.mulf %111, %87 : vector<2x32xf32>
    %115 = arith.mulf %110, %112 : vector<2x32xf32>
    %116 = arith.addf %114, %115 : vector<2x32xf32>
    %117 = math.tanh %116 : vector<2x32xf32>
    %118 = arith.mulf %113, %117 : vector<2x32xf32>
    %c0_47 = arith.constant 0 : index
    %119 = arith.index_cast %98 : i32 to index
    %c0_48 = arith.constant 0 : index
    %c0_49 = arith.constant 0 : index
    %120 = vector.load %arg4[%c0_47, %119, %c0_48, %c0_49] : memref<1x8x2x32xf32, #tpu.memory_space<vmem>>, vector<1x1x2x32xf32>
    %121 = vector.shape_cast %120 : vector<1x1x2x32xf32> to vector<2x32xf32>
    %122 = vector.shape_cast %118 : vector<2x32xf32> to vector<1x1x2x32xf32>
    tpu.vector_store %arg4[%c0_47, %119, %c0_48, %c0_49], %122 {strides = array<i32>} : memref<1x8x2x32xf32, #tpu.memory_space<vmem>>, vector<1x1x2x32xf32>,
    %c4_i32 = arith.constant 4 : i32
    %c7_i32_50 = arith.constant 7 : i32
    %123 = arith.muli %arg0, %c7_i32_50 : i32
    %c2_i32_51 = arith.constant 2 : i32
    %124 = arith.muli %c2_i32_51, %arg0 : i32
    %c1_i32_52 = arith.constant 1 : i32
    %125 = arith.subi %c1_i32_52, %124 : i32
    %126 = arith.muli %125, %c4_i32 : i32
    %127 = arith.addi %123, %126 : i32
    %c0_53 = arith.constant 0 : index
    %128 = arith.index_cast %127 : i32 to index
    %c0_54 = arith.constant 0 : index
    %c0_55 = arith.constant 0 : index
    %129 = vector.load %arg2[%c0_53, %128, %c0_54, %c0_55] : memref<1x8x2x128xf32, #tpu.memory_space<vmem>>, vector<1x1x2x128xf32>
    %130 = vector.shape_cast %129 : vector<1x1x2x128xf32> to vector<2x128xf32>
    %cst_56 = arith.constant dense<0.000000e+00> : vector<2x128xf32>
    %131 = tpu.matmul %118, %4, %cst_56 {dimension_numbers = #tpu.dot_dimension_numbers<[1], [0], [0], [1], [0, 0, 1, 1], [], []>} : vector<2x32xf32>, vector<32x128xf32>, vector<2x128xf32> -> vector<2x128xf32>
    %132 = arith.addf %130, %131 : vector<2x128xf32>
    %133 = arith.negf %132 : vector<2x128xf32>
    %134 = math.exp %133 : vector<2x128xf32>
    %cst_57 = arith.constant 1.000000e+00 : f32
    %135 = vector.broadcast %cst_57 : f32 to vector<2x128xf32>
    %136 = arith.addf %135, %134 : vector<2x128xf32>
    %137 = arith.divf %135, %136 : vector<2x128xf32>
    %138 = math.tanh %132 : vector<2x128xf32>
    %139 = vector.extract_strided_slice %137 {offsets = [0, 0], sizes = [2, 32], strides = [1, 1]} : vector<2x128xf32> to vector<2x32xf32>
    %140 = vector.extract_strided_slice %137 {offsets = [0, 32], sizes = [2, 32], strides = [1, 1]} : vector<2x128xf32> to vector<2x32xf32>
    %141 = vector.extract_strided_slice %138 {offsets = [0, 64], sizes = [2, 32], strides = [1, 1]} : vector<2x128xf32> to vector<2x32xf32>
    %142 = vector.extract_strided_slice %137 {offsets = [0, 96], sizes = [2, 32], strides = [1, 1]} : vector<2x128xf32> to vector<2x32xf32>
    %143 = arith.mulf %140, %116 : vector<2x32xf32>
    %144 = arith.mulf %139, %141 : vector<2x32xf32>
    %145 = arith.addf %143, %144 : vector<2x32xf32>
    %146 = math.tanh %145 : vector<2x32xf32>
    %147 = arith.mulf %142, %146 : vector<2x32xf32>
    %c0_58 = arith.constant 0 : index
    %148 = arith.index_cast %127 : i32 to index
    %c0_59 = arith.constant 0 : index
    %c0_60 = arith.constant 0 : index
    %149 = vector.load %arg4[%c0_58, %148, %c0_59, %c0_60] : memref<1x8x2x32xf32, #tpu.memory_space<vmem>>, vector<1x1x2x32xf32>
    %150 = vector.shape_cast %149 : vector<1x1x2x32xf32> to vector<2x32xf32>
    %151 = vector.shape_cast %147 : vector<2x32xf32> to vector<1x1x2x32xf32>
    tpu.vector_store %arg4[%c0_58, %148, %c0_59, %c0_60], %151 {strides = array<i32>} : memref<1x8x2x32xf32, #tpu.memory_space<vmem>>, vector<1x1x2x32xf32>,
    %c5_i32 = arith.constant 5 : i32
    %c7_i32_61 = arith.constant 7 : i32
    %152 = arith.muli %arg0, %c7_i32_61 : i32
    %c2_i32_62 = arith.constant 2 : i32
    %153 = arith.muli %c2_i32_62, %arg0 : i32
    %c1_i32_63 = arith.constant 1 : i32
    %154 = arith.subi %c1_i32_63, %153 : i32
    %155 = arith.muli %154, %c5_i32 : i32
    %156 = arith.addi %152, %155 : i32
    %c0_64 = arith.constant 0 : index
    %157 = arith.index_cast %156 : i32 to index
    %c0_65 = arith.constant 0 : index
    %c0_66 = arith.constant 0 : index
    %158 = vector.load %arg2[%c0_64, %157, %c0_65, %c0_66] : memref<1x8x2x128xf32, #tpu.memory_space<vmem>>, vector<1x1x2x128xf32>
    %159 = vector.shape_cast %158 : vector<1x1x2x128xf32> to vector<2x128xf32>
    %cst_67 = arith.constant dense<0.000000e+00> : vector<2x128xf32>
    %160 = tpu.matmul %147, %4, %cst_67 {dimension_numbers = #tpu.dot_dimension_numbers<[1], [0], [0], [1], [0, 0, 1, 1], [], []>} : vector<2x32xf32>, vector<32x128xf32>, vector<2x128xf32> -> vector<2x128xf32>
    %161 = arith.addf %159, %160 : vector<2x128xf32>
    %162 = arith.negf %161 : vector<2x128xf32>
    %163 = math.exp %162 : vector<2x128xf32>
    %cst_68 = arith.constant 1.000000e+00 : f32
    %164 = vector.broadcast %cst_68 : f32 to vector<2x128xf32>
    %165 = arith.addf %164, %163 : vector<2x128xf32>
    %166 = arith.divf %164, %165 : vector<2x128xf32>
    %167 = math.tanh %161 : vector<2x128xf32>
    %168 = vector.extract_strided_slice %166 {offsets = [0, 0], sizes = [2, 32], strides = [1, 1]} : vector<2x128xf32> to vector<2x32xf32>
    %169 = vector.extract_strided_slice %166 {offsets = [0, 32], sizes = [2, 32], strides = [1, 1]} : vector<2x128xf32> to vector<2x32xf32>
    %170 = vector.extract_strided_slice %167 {offsets = [0, 64], sizes = [2, 32], strides = [1, 1]} : vector<2x128xf32> to vector<2x32xf32>
    %171 = vector.extract_strided_slice %166 {offsets = [0, 96], sizes = [2, 32], strides = [1, 1]} : vector<2x128xf32> to vector<2x32xf32>
    %172 = arith.mulf %169, %145 : vector<2x32xf32>
    %173 = arith.mulf %168, %170 : vector<2x32xf32>
    %174 = arith.addf %172, %173 : vector<2x32xf32>
    %175 = math.tanh %174 : vector<2x32xf32>
    %176 = arith.mulf %171, %175 : vector<2x32xf32>
    %c0_69 = arith.constant 0 : index
    %177 = arith.index_cast %156 : i32 to index
    %c0_70 = arith.constant 0 : index
    %c0_71 = arith.constant 0 : index
    %178 = vector.load %arg4[%c0_69, %177, %c0_70, %c0_71] : memref<1x8x2x32xf32, #tpu.memory_space<vmem>>, vector<1x1x2x32xf32>
    %179 = vector.shape_cast %178 : vector<1x1x2x32xf32> to vector<2x32xf32>
    %180 = vector.shape_cast %176 : vector<2x32xf32> to vector<1x1x2x32xf32>
    tpu.vector_store %arg4[%c0_69, %177, %c0_70, %c0_71], %180 {strides = array<i32>} : memref<1x8x2x32xf32, #tpu.memory_space<vmem>>, vector<1x1x2x32xf32>,
    %c6_i32 = arith.constant 6 : i32
    %c7_i32_72 = arith.constant 7 : i32
    %181 = arith.muli %arg0, %c7_i32_72 : i32
    %c2_i32_73 = arith.constant 2 : i32
    %182 = arith.muli %c2_i32_73, %arg0 : i32
    %c1_i32_74 = arith.constant 1 : i32
    %183 = arith.subi %c1_i32_74, %182 : i32
    %184 = arith.muli %183, %c6_i32 : i32
    %185 = arith.addi %181, %184 : i32
    %c0_75 = arith.constant 0 : index
    %186 = arith.index_cast %185 : i32 to index
    %c0_76 = arith.constant 0 : index
    %c0_77 = arith.constant 0 : index
    %187 = vector.load %arg2[%c0_75, %186, %c0_76, %c0_77] : memref<1x8x2x128xf32, #tpu.memory_space<vmem>>, vector<1x1x2x128xf32>
    %188 = vector.shape_cast %187 : vector<1x1x2x128xf32> to vector<2x128xf32>
    %cst_78 = arith.constant dense<0.000000e+00> : vector<2x128xf32>
    %189 = tpu.matmul %176, %4, %cst_78 {dimension_numbers = #tpu.dot_dimension_numbers<[1], [0], [0], [1], [0, 0, 1, 1], [], []>} : vector<2x32xf32>, vector<32x128xf32>, vector<2x128xf32> -> vector<2x128xf32>
    %190 = arith.addf %188, %189 : vector<2x128xf32>
    %191 = arith.negf %190 : vector<2x128xf32>
    %192 = math.exp %191 : vector<2x128xf32>
    %cst_79 = arith.constant 1.000000e+00 : f32
    %193 = vector.broadcast %cst_79 : f32 to vector<2x128xf32>
    %194 = arith.addf %193, %192 : vector<2x128xf32>
    %195 = arith.divf %193, %194 : vector<2x128xf32>
    %196 = math.tanh %190 : vector<2x128xf32>
    %197 = vector.extract_strided_slice %195 {offsets = [0, 0], sizes = [2, 32], strides = [1, 1]} : vector<2x128xf32> to vector<2x32xf32>
    %198 = vector.extract_strided_slice %195 {offsets = [0, 32], sizes = [2, 32], strides = [1, 1]} : vector<2x128xf32> to vector<2x32xf32>
    %199 = vector.extract_strided_slice %196 {offsets = [0, 64], sizes = [2, 32], strides = [1, 1]} : vector<2x128xf32> to vector<2x32xf32>
    %200 = vector.extract_strided_slice %195 {offsets = [0, 96], sizes = [2, 32], strides = [1, 1]} : vector<2x128xf32> to vector<2x32xf32>
    %201 = arith.mulf %198, %174 : vector<2x32xf32>
    %202 = arith.mulf %197, %199 : vector<2x32xf32>
    %203 = arith.addf %201, %202 : vector<2x32xf32>
    %204 = math.tanh %203 : vector<2x32xf32>
    %205 = arith.mulf %200, %204 : vector<2x32xf32>
    %c0_80 = arith.constant 0 : index
    %206 = arith.index_cast %185 : i32 to index
    %c0_81 = arith.constant 0 : index
    %c0_82 = arith.constant 0 : index
    %207 = vector.load %arg4[%c0_80, %206, %c0_81, %c0_82] : memref<1x8x2x32xf32, #tpu.memory_space<vmem>>, vector<1x1x2x32xf32>
    %208 = vector.shape_cast %207 : vector<1x1x2x32xf32> to vector<2x32xf32>
    %209 = vector.shape_cast %205 : vector<2x32xf32> to vector<1x1x2x32xf32>
    tpu.vector_store %arg4[%c0_80, %206, %c0_81, %c0_82], %209 {strides = array<i32>} : memref<1x8x2x32xf32, #tpu.memory_space<vmem>>, vector<1x1x2x32xf32>,
    %c7_i32_83 = arith.constant 7 : i32
    %c7_i32_84 = arith.constant 7 : i32
    %210 = arith.muli %arg0, %c7_i32_84 : i32
    %c2_i32_85 = arith.constant 2 : i32
    %211 = arith.muli %c2_i32_85, %arg0 : i32
    %c1_i32_86 = arith.constant 1 : i32
    %212 = arith.subi %c1_i32_86, %211 : i32
    %213 = arith.muli %212, %c7_i32_83 : i32
    %214 = arith.addi %210, %213 : i32
    %c0_87 = arith.constant 0 : index
    %215 = arith.index_cast %214 : i32 to index
    %c0_88 = arith.constant 0 : index
    %c0_89 = arith.constant 0 : index
    %216 = vector.load %arg2[%c0_87, %215, %c0_88, %c0_89] : memref<1x8x2x128xf32, #tpu.memory_space<vmem>>, vector<1x1x2x128xf32>
    %217 = vector.shape_cast %216 : vector<1x1x2x128xf32> to vector<2x128xf32>
    %cst_90 = arith.constant dense<0.000000e+00> : vector<2x128xf32>
    %218 = tpu.matmul %205, %4, %cst_90 {dimension_numbers = #tpu.dot_dimension_numbers<[1], [0], [0], [1], [0, 0, 1, 1], [], []>} : vector<2x32xf32>, vector<32x128xf32>, vector<2x128xf32> -> vector<2x128xf32>
    %219 = arith.addf %217, %218 : vector<2x128xf32>
    %220 = arith.negf %219 : vector<2x128xf32>
    %221 = math.exp %220 : vector<2x128xf32>
    %cst_91 = arith.constant 1.000000e+00 : f32
    %222 = vector.broadcast %cst_91 : f32 to vector<2x128xf32>
    %223 = arith.addf %222, %221 : vector<2x128xf32>
    %224 = arith.divf %222, %223 : vector<2x128xf32>
    %225 = math.tanh %219 : vector<2x128xf32>
    %226 = vector.extract_strided_slice %224 {offsets = [0, 0], sizes = [2, 32], strides = [1, 1]} : vector<2x128xf32> to vector<2x32xf32>
    %227 = vector.extract_strided_slice %224 {offsets = [0, 32], sizes = [2, 32], strides = [1, 1]} : vector<2x128xf32> to vector<2x32xf32>
    %228 = vector.extract_strided_slice %225 {offsets = [0, 64], sizes = [2, 32], strides = [1, 1]} : vector<2x128xf32> to vector<2x32xf32>
    %229 = vector.extract_strided_slice %224 {offsets = [0, 96], sizes = [2, 32], strides = [1, 1]} : vector<2x128xf32> to vector<2x32xf32>
    %230 = arith.mulf %227, %203 : vector<2x32xf32>
    %231 = arith.mulf %226, %228 : vector<2x32xf32>
    %232 = arith.addf %230, %231 : vector<2x32xf32>
    %233 = math.tanh %232 : vector<2x32xf32>
    %234 = arith.mulf %229, %233 : vector<2x32xf32>
    %c0_92 = arith.constant 0 : index
    %235 = arith.index_cast %214 : i32 to index
    %c0_93 = arith.constant 0 : index
    %c0_94 = arith.constant 0 : index
    %236 = vector.load %arg4[%c0_92, %235, %c0_93, %c0_94] : memref<1x8x2x32xf32, #tpu.memory_space<vmem>>, vector<1x1x2x32xf32>
    %237 = vector.shape_cast %236 : vector<1x1x2x32xf32> to vector<2x32xf32>
    %238 = vector.shape_cast %234 : vector<2x32xf32> to vector<1x1x2x32xf32>
    tpu.vector_store %arg4[%c0_92, %235, %c0_93, %c0_94], %238 {strides = array<i32>} : memref<1x8x2x32xf32, #tpu.memory_space<vmem>>, vector<1x1x2x32xf32>,
    %c8_i32 = arith.constant 8 : i32
    %c0_95 = arith.constant 0 : index
    %c0_96 = arith.constant 0 : index
    %239 = vector.load %arg5[%c0_95, %c0_96] : memref<2x32xf32, #tpu.memory_space<vmem>>, vector<2x32xf32>
    tpu.vector_store %arg5[%c0_95, %c0_96], %234 {strides = array<i32>} : memref<2x32xf32, #tpu.memory_space<vmem>>, vector<2x32xf32>,
    %c0_97 = arith.constant 0 : index
    %c0_98 = arith.constant 0 : index
    %240 = vector.load %arg6[%c0_97, %c0_98] : memref<2x32xf32, #tpu.memory_space<vmem>>, vector<2x32xf32>
    tpu.vector_store %arg6[%c0_97, %c0_98], %232 {strides = array<i32>} : memref<2x32xf32, #tpu.memory_space<vmem>>, vector<2x32xf32>,
    return
  }
  func.func @transform_0(%arg0: i32, %arg1: i32) -> (i32, i32, i32, i32) {
    %c0_i32 = arith.constant 0 : i32
    %0 = arith.muli %arg0, %c0_i32 : i32
    %c2_i32 = arith.constant 2 : i32
    %1 = arith.muli %c2_i32, %arg0 : i32
    %c1_i32 = arith.constant 1 : i32
    %2 = arith.subi %c1_i32, %1 : i32
    %3 = arith.muli %2, %arg1 : i32
    %4 = arith.addi %0, %3 : i32
    %c0_i32_0 = arith.constant 0 : i32
    %c0_i32_1 = arith.constant 0 : i32
    %c0_i32_2 = arith.constant 0 : i32
    return %arg0, %4, %c0_i32_0, %c0_i32_1 : i32, i32, i32, i32
  }
  func.func @transform_1(%arg0: i32, %arg1: i32) -> (i32, i32, i32) {
    %c0_i32 = arith.constant 0 : i32
    %c0_i32_0 = arith.constant 0 : i32
    %c0_i32_1 = arith.constant 0 : i32
    return %arg0, %c0_i32, %c0_i32_0 : i32, i32, i32
  }
  func.func @transform_2(%arg0: i32, %arg1: i32) -> (i32, i32, i32, i32) {
    %c0_i32 = arith.constant 0 : i32
    %0 = arith.muli %arg0, %c0_i32 : i32
    %c2_i32 = arith.constant 2 : i32
    %1 = arith.muli %c2_i32, %arg0 : i32
    %c1_i32 = arith.constant 1 : i32
    %2 = arith.subi %c1_i32, %1 : i32
    %3 = arith.muli %2, %arg1 : i32
    %4 = arith.addi %0, %3 : i32
    %c0_i32_0 = arith.constant 0 : i32
    %c0_i32_1 = arith.constant 0 : i32
    %c0_i32_2 = arith.constant 0 : i32
    return %arg0, %4, %c0_i32_0, %c0_i32_1 : i32, i32, i32, i32
  }
}

</mosaic_0001>

<llo_original>
// kernel: lstm_forward.2
$region0: #{lstm_forward.2}
  #allocation0 [shape = 'u32[]', space=smem, size = 0x4, offset = 0x4, fixed_abs, tag = 'smem constant byte address 0x4 - core index']
  #allocation1 [shape = 'u32[144,128]{1,0:T(1,128)}', space=vmem, size = 0x12000, scoped, tag = 'internal scratch']
  #allocation2 [shape = 'f32[2,32]{1,0:T(2,128)}', space=vmem, size = 0x400, scoped, tag = 'scratch operand']
  #allocation3 [shape = 'f32[2,32]{1,0:T(2,128)}', space=vmem, size = 0x400, scoped, tag = 'scratch operand']
  %s0 = inlined_call_operand.vmem [shape: f32[2,8,2,128], index: 0, kind: input, shape index: {}]
  %s1 = inlined_call_operand.vmem [shape: f32[2,32,128], index: 1, kind: input, shape index: {}]
  %s2 = inlined_call_operand.vmem [shape: f32[2,8,2,32], index: 2, kind: output, shape index: {}]
  %s3 = sld [smem:[#allocation0]]
  $region45: #{lstm_forward.2} parent=0
    _
  %s5 = ssub.s32 1, %s3
  %s6 = scalar_select 0, %s5, %s3
  loop: start=0, step=1, limit=4
  $region2: #{lstm_forward.2} parent=0 // loop_pre_header
    _
  $region3: #{lstm_forward.2} parent=0 // loop_header
    %s8 = sphi 0, %s12
    %p9 = scmp.ge.s32.totalorder %s8, 4
    %s15 = sphi 0, %s27
    %s16 = sphi 0, %s23
    %s17 = sphi 0, %s15
    %s18 = sphi 0, %s16
    %s19 = sphi 0, %s17
    %s20 = sphi 0, %s18
    %s38 = sphi 0, %s40
    %s41 = sphi 0, %s38
    %s42 = sphi 0, %s41
    %s58 = sphi 0, %s42
    %s64 = sphi 0, %s66
    %s67 = sphi 0, %s64
    %s68 = sphi 0, %s67
    %s84 = sphi 0, %s68
    %s98 = sphi 0, %s100
    %s101 = sphi 0, %s98
    %s102 = sphi 0, %s101
    %s118 = sphi 0, %s102
  $region4: #{lstm_forward.2} parent=0 // loop_header_branch
    %11 = sbr.rel (%p9) target = $region8
  $region5: #{lstm_forward.2} parent=0 // loop_body
    %s13 = ssub.s32 %s8, 1
    %s14 = ssub.s32 %s8, 2
    %s21 = sadd.s32 1, %s16
    %p22 = scmp.ge.s32.totalorder %s21, 1
    %s23 = scalar_select %p22, 0, %s21
    %s24 = sadd.s32 1, %s15
    %s25 = scalar_select %p22, %s24, %s15
    %p26 = scmp.ge.s32.totalorder %s25, 2
    %s27 = scalar_select %p26, 0, %s25
    %s28 = smul.u32 %s15, 2
    %s29 = ssub.s32 1, %s28
    %s30 = smul.u32 %s29, %s16
    %s31 = smul.u32 %s27, 2
    %s32 = ssub.s32 1, %s31
    %s33 = smul.u32 %s32, %s23
    %s34 = ssub.s32 %s15, %s27
    %s35 = ssub.s32 %s30, %s33
    %s36 = sor.u32 %s34, %s35
    %p37 = scmp.eq.s32.totalorder %s36, 0
    %s39 = sadd.s32 %s38, 1
    %s40 = scalar_select %p37, %s38, %s39
    %p43 = pneg %p37
    %p44 = scmp.eq.s32.totalorder %s8, 1
    %p45 = por %p43, %p44
    %p46 = scmp.ne.s32.totalorder %s38, %s41
    %p47 = scmp.eq.s32.totalorder %s8, 0
    %p48 = por %p46, %p47
    %p49 = scmp.ne.s32.totalorder %s38, %s41
    %p50 = scmp.eq.s32.totalorder %s13, 1
    %p51 = por %p49, %p50
    %p52 = scmp.ne.s32.totalorder %s41, %s42
    %p53 = scmp.eq.s32.totalorder %s13, 0
    %p54 = por %p52, %p53
    %p55 = scmp.ne.s32.totalorder %s41, %s42
    %p56 = scmp.eq.s32.totalorder %s14, 1
    %p57 = por %p55, %p56
    %p59 = scmp.ne.s32.totalorder %s42, %s58
    %p60 = scmp.eq.s32.totalorder %s14, 0
    %p61 = por %p59, %p60
    %s62 = ssub.s32 %s15, %s27
    %p63 = scmp.eq.s32.totalorder %s62, 0
    %s65 = sadd.s32 %s64, 1
    %s66 = scalar_select %p63, %s64, %s65
    %p69 = pneg %p63
    %p70 = scmp.eq.s32.totalorder %s8, 1
    %p71 = por %p69, %p70
    %p72 = scmp.ne.s32.totalorder %s64, %s67
    %p73 = scmp.eq.s32.totalorder %s8, 0
    %p74 = por %p72, %p73
    %p75 = scmp.ne.s32.totalorder %s64, %s67
    %p76 = scmp.eq.s32.totalorder %s13, 1
    %p77 = por %p75, %p76
    %p78 = scmp.ne.s32.totalorder %s67, %s68
    %p79 = scmp.eq.s32.totalorder %s13, 0
    %p80 = por %p78, %p79
    %p81 = scmp.ne.s32.totalorder %s67, %s68
    %p82 = scmp.eq.s32.totalorder %s14, 1
    %p83 = por %p81, %p82
    %p85 = scmp.ne.s32.totalorder %s68, %s84
    %p86 = scmp.eq.s32.totalorder %s14, 0
    %p87 = por %p85, %p86
    %s88 = smul.u32 %s15, 2
    %s89 = ssub.s32 1, %s88
    %s90 = smul.u32 %s89, %s16
    %s91 = smul.u32 %s27, 2
    %s92 = ssub.s32 1, %s91
    %s93 = smul.u32 %s92, %s23
    %s94 = ssub.s32 %s15, %s27
    %s95 = ssub.s32 %s90, %s93
    %s96 = sor.u32 %s94, %s95
    %p97 = scmp.eq.s32.totalorder %s96, 0
    %s99 = sadd.s32 %s98, 1
    %s100 = scalar_select %p97, %s98, %s99
    %p103 = pneg %p97
    %p104 = scmp.eq.s32.totalorder %s8, 1
    %p105 = por %p103, %p104
    %p106 = scmp.ne.s32.totalorder %s98, %s101
    %p107 = scmp.eq.s32.totalorder %s8, 0
    %p108 = por %p106, %p107
    %p109 = scmp.ne.s32.totalorder %s98, %s101
    %p110 = scmp.eq.s32.totalorder %s13, 1
    %p111 = por %p109, %p110
    %p112 = scmp.ne.s32.totalorder %s101, %s102
    %p113 = scmp.eq.s32.totalorder %s13, 0
    %p114 = por %p112, %p113
    %p115 = scmp.ne.s32.totalorder %s101, %s102
    %p116 = scmp.eq.s32.totalorder %s14, 1
    %p117 = por %p115, %p116
    %p119 = scmp.ne.s32.totalorder %s102, %s118
    %p120 = scmp.eq.s32.totalorder %s14, 0
    %p121 = por %p119, %p120
    %p122 = scmp.le.s32.totalorder 1, %s8
    %p123 = scmp.lt.s32.totalorder %s8, 3
    %p124 = pnand %p122, %p123
    %p125 = pneg %p124
    // Predicated region
    $region9: #{lstm_forward.2} parent=5 // pred_check
      _
    $region10: #{lstm_forward.2} parent=5 // pred_check_branch
      %127 = sbr.rel (%p124) target = $region12
    $region11: #{lstm_forward.2} parent=5 // pred_region
      %s128 = ssub.s32 %s8, 1
    $region12: #{lstm_forward.2} parent=5 // pred_fallthru
      _
    %p129 = scmp.lt.s32.totalorder %s8, 2
    // Predicated region
    $region13: #{lstm_forward.2} parent=5 // pred_check
      %p130 = pneg %p129
    $region14: #{lstm_forward.2} parent=5 // pred_check_branch
      %132 = sbr.rel (%p130) target = $region16
    $region15: #{lstm_forward.2} parent=5 // pred_region
      // Predicated region
      $region17: #{lstm_forward.2} parent=15 // pred_check
        %p133 = pneg %p48
      $region18: #{lstm_forward.2} parent=15 // pred_check_branch
        %135 = sbr.rel (%p133) target = $region20
      $region19: #{lstm_forward.2} parent=15 // pred_region
        %s136 = smul.u32 %s15, 2
        %s137 = ssub.s32 1, %s136
        %s138 = smul.u32 %s137, %s16
        %s139 = smul.u32 8, %s138
        %p140 = scmp.lt.s32.totalorder %s15, 1
        %s141 = scalar_select %p140, %s15, 1
        %p142 = scmp.lt.s32.totalorder %s139, 7
        %s143 = scalar_select %p142, %s139, 7
        %s144 = smul.addr %s141, 8
        %s145 = sadd.s32 %s143, %s144
        %s146 = smul.addr %s145, 2
        %s147 = scalar_lea.vmem %s0, %s146
        %s148 = smul.u32 %s15, 2
        %s149 = ssub.s32 1, %s148
        %s150 = smul.u32 %s149, %s16
        %s151 = smul.u32 8, %s150
      $region20: #{lstm_forward.2} parent=15 // pred_fallthru
        _
      // Predicated region
      $region21: #{lstm_forward.2} parent=15 // pred_check
        %p152 = pneg %p74
      $region22: #{lstm_forward.2} parent=15 // pred_check_branch
        %154 = sbr.rel (%p152) target = $region24
      $region23: #{lstm_forward.2} parent=15 // pred_region
        %p155 = scmp.lt.s32.totalorder %s15, 1
        %s156 = scalar_select %p155, %s15, 1
        %s157 = smul.addr %s156, 4
        %s158 = smul.addr %s157, 8
        %s159 = scalar_lea.vmem %s1, %s158
      $region24: #{lstm_forward.2} parent=15 // pred_fallthru
        _
    $region16: #{lstm_forward.2} parent=5 // pred_fallthru
      _
    %p160 = scmp.le.s32.totalorder 1, %s8
    %p161 = scmp.lt.s32.totalorder %s8, 3
    %p162 = pnand %p160, %p161
    %p163 = pneg %p162
    // Predicated region
    $region25: #{lstm_forward.2} parent=5 // pred_check
      _
    $region26: #{lstm_forward.2} parent=5 // pred_check_branch
      %165 = sbr.rel (%p162) target = $region28
    $region27: #{lstm_forward.2} parent=5 // pred_region
      %s166 = ssub.s32 %s8, 1
      %s167 = smul.u32 %s17, 2
      %s168 = ssub.s32 1, %s167
      %s169 = smul.u32 %s168, %s18
      %s170 = smul.u32 8, %s169
      %p171 = scmp.lt.s32.totalorder %s17, 1
      %s172 = scalar_select %p171, %s17, 1
      %p173 = scmp.lt.s32.totalorder %s170, 7
      %s174 = scalar_select %p173, %s170, 7
      %s175 = smul.addr %s172, 8
      %s176 = sadd.s32 %s174, %s175
      %s177 = smul.addr %s176, 2
      %s178 = scalar_lea.vmem %s0, %s177
      %p179 = pneg %p54
      %p180 = pneg %p51
      %p181 = scmp.lt.s32.totalorder %s17, 1
      %s182 = scalar_select %p181, %s17, 1
      %s183 = smul.addr %s182, 4
      %s184 = smul.addr %s183, 8
      %s185 = scalar_lea.vmem %s1, %s184
      %p186 = pneg %p80
      %p187 = pneg %p77
      %p188 = pneg %p114
      %p189 = pneg %p111
      %s190 = smul.u32 %s17, 2
      %s191 = ssub.s32 1, %s190
      %s192 = smul.u32 %s191, %s18
      %s193 = smul.u32 8, %s192
      %p194 = scmp.lt.s32.totalorder %s17, 1
      %s195 = scalar_select %p194, %s17, 1
      %p196 = scmp.lt.s32.totalorder %s193, 7
      %s197 = scalar_select %p196, %s193, 7
      %s198 = smul.addr %s195, 8
      %s199 = sadd.s32 %s197, %s198
      %s200 = smul.addr %s199, 2
      %s201 = scalar_lea.vmem %s2, %s200
      %s202 = smul.u32 %s17, 2
      %s203 = ssub.s32 1, %s202
      %s204 = smul.u32 %s203, %s18
      %s205 = smul.u32 8, %s204
      %p206 = scmp.lt.s32.totalorder %s17, 1
      %s207 = scalar_select %p206, %s17, 1
      %p208 = scmp.lt.s32.totalorder %s205, 7
      %s209 = scalar_select %p208, %s205, 7
      %s210 = smul.addr %s207, 8
      %s211 = sadd.s32 %s209, %s210
      %s212 = smul.addr %s211, 2
      %s213 = scalar_lea.vmem %s0, %s212
      %s214 = smul.u32 %s17, 2
      %s215 = ssub.s32 1, %s214
      %s216 = smul.u32 %s215, %s18
      %s217 = smul.u32 8, %s216
      %p218 = scmp.lt.s32.totalorder %s17, 1
      %s219 = scalar_select %p218, %s17, 1
      %s220 = smul.addr %s219, 4
      %s221 = smul.addr %s220, 8
      %s222 = scalar_lea.vmem %s1, %s221
      %s223 = smul.u32 %s17, 2
      %s224 = ssub.s32 1, %s223
      %s225 = smul.u32 %s224, %s18
      %s226 = smul.u32 8, %s225
      %p227 = scmp.lt.s32.totalorder %s17, 1
      %s228 = scalar_select %p227, %s17, 1
      %p229 = scmp.lt.s32.totalorder %s226, 7
      %s230 = scalar_select %p229, %s226, 7
      %s231 = smul.addr %s228, 8
      %s232 = sadd.s32 %s230, %s231
      %s233 = smul.addr %s232, 2
      %s234 = scalar_lea.vmem %s2, %s233
      %s235 = smul.u32 %s17, 2
      %s236 = ssub.s32 1, %s235
      %s237 = smul.u32 %s236, %s18
      %s238 = smul.u32 8, %s237
      %p239 = scmp.eq.s32.totalorder %s18, 0
      // Predicated region
      $region29: #{lstm_forward.2} parent=27 // pred_check
        %p240 = pneg %p239
      $region30: #{lstm_forward.2} parent=27 // pred_check_branch
        %242 = sbr.rel (%p240) target = $region32
      $region31: #{lstm_forward.2} parent=27 // pred_region
        %vm243 = vcmask 254976
        %244 = vst.msk [vmem:[#allocation2] sm:$0x3] %vm243, 0.0
        %245 = vst.msk [vmem:[#allocation3] sm:$0x3] %vm243, 0.0
      $region32: #{lstm_forward.2} parent=27 // pred_fallthru
        _
      %v246 = vld [vmem:[%s222] sm:$0xff]
      %v247 = vld [vmem:[%s222 + $0x8] sm:$0xff]
      %v248 = vld [vmem:[%s222 + $0x10] sm:$0xff]
      %v249 = vld [vmem:[%s222 + $0x18] sm:$0xff]
      %v250 = vld [vmem:[#allocation2] sm:$0x3]
      %v251 = vld [vmem:[#allocation3] sm:$0x3]
      %s252 = smul.u32 %s17, 7
      %s253 = smul.u32 %s252, 2
      %s254 = scalar_lea.vmem %s213, %s253
      %v255 = vld [vmem:[%s254] sm:$0x3]
      %vm256 = vcmask 261120
      %v258 = vsel %vm256, %v250, 0
      %260 = vmatprep.subr.mxu0 0.0
      %261 = vmatpush1.msra.mxu0 0.0
      %262 = vmatprep.subr.mxu0 0.0
      %263 = vmatpush1.msra.mxu0 0.0
      %264 = vmatprep.subr.mxu0 0.0
      %265 = vmatpush1.msra.mxu0 0.0
      %266 = vmatprep.subr.mxu0 0.0
      %267 = vmatpush1.msra.mxu0 0.0
      %268 = vmatprep.subr.mxu0 0.0
      %269 = vmatpush1.msra.mxu0 0.0
      %270 = vmatprep.subr.mxu0 0.0
      %271 = vmatpush1.msra.mxu0 0.0
      %272 = vmatprep.subr.mxu0 0.0
      %273 = vmatpush1.msra.mxu0 0.0
      %274 = vmatprep.subr.mxu0 0.0
      %275 = vmatpush1.msra.mxu0 0.0
      %276 = vmatprep.subr.mxu0 0.0
      %277 = vmatpush1.msra.mxu0 0.0
      %278 = vmatprep.subr.mxu0 0.0
      %279 = vmatpush1.msra.mxu0 0.0
      %280 = vmatprep.subr.mxu0 0.0
      %281 = vmatpush1.msra.mxu0 0.0
      %282 = vmatprep.subr.mxu0 0.0
      %283 = vmatpush1.msra.mxu0 0.0
      %284 = vmatprep.subr.mxu0 0.0
      %285 = vmatpush1.msra.mxu0 %v249
      %286 = vmatprep.subr.mxu0 0.0
      %287 = vmatpush1.msra.mxu0 %v248
      %288 = vmatprep.subr.mxu0 0.0
      %289 = vmatpush1.msra.mxu0 %v247
      %290 = vmatprep.subr.mxu0 0.0
      %291 = vmatpush1.msra.mxu0 %v246
      %292 = vmatprep.subr.mxu0 0.0
      %293 = vmatpush2.msra.mxu0 0.0
      %294 = vmatprep.subr.mxu0 0.0
      %295 = vmatpush2.msra.mxu0 0.0
      %296 = vmatprep.subr.mxu0 0.0
      %297 = vmatpush2.msra.mxu0 0.0
      %298 = vmatprep.subr.mxu0 0.0
      %299 = vmatpush2.msra.mxu0 0.0
      %300 = vmatprep.subr.mxu0 0.0
      %301 = vmatpush2.msra.mxu0 0.0
      %302 = vmatprep.subr.mxu0 0.0
      %303 = vmatpush2.msra.mxu0 0.0
      %304 = vmatprep.subr.mxu0 0.0
      %305 = vmatpush2.msra.mxu0 0.0
      %306 = vmatprep.subr.mxu0 0.0
      %307 = vmatpush2.msra.mxu0 0.0
      %308 = vmatprep.subr.mxu0 0.0
      %309 = vmatpush2.msra.mxu0 0.0
      %310 = vmatprep.subr.mxu0 0.0
      %311 = vmatpush2.msra.mxu0 0.0
      %312 = vmatprep.subr.mxu0 0.0
      %313 = vmatpush2.msra.mxu0 0.0
      %314 = vmatprep.subr.mxu0 0.0
      %315 = vmatpush2.msra.mxu0 0.0
      %316 = vmatprep.subr.mxu0 0.0
      %317 = vmatpush2.msra.mxu0 0.0
      %318 = vmatprep.subr.mxu0 0.0
      %319 = vmatpush2.msra.mxu0 0.0
      %320 = vmatprep.subr.mxu0 0.0
      %321 = vmatpush2.msra.mxu0 0.0
      %322 = vmatprep.subr.mxu0 0.0
      %323 = vmatpush2.msra.mxu0 0.0
      %324 = vmatprep.mubr.f32.mxu0 0.0
      %325 = vmatmul.mubr.f32.gmra.mxu0 %v258
      %v326 = vpop.f32.mrf.mxu0
      %v327 = vadd.f32 0.0, %v326
      %v328 = vpop.f32.mrf.mxu0
      %329 = vdwg.mxu0
      %v330 = vadd.f32 %v255, %v327
      %v331 = vxor.u32 %v330, 2147483648
      %v332 = vmul.f32 %v331, 1.442695
      %v333 = vpow.pop %v332
      %v334 = vadd.f32 %v333, 1.0
      %v335 = vrcp.pop %v334
      %v336 = vmul.f32 1.0, %v335
      %v337 = vtanh.pop %v330
      %339 = vrot.lane.b32.xlu0 %v251, 32
      %v340 = vpop.permute.xlu0 %339
      %v342 = vmul.f32 %v336, %v340
      %344 = vrot.lane.b32.xlu0 %v337, 64
      %v345 = vpop.permute.xlu0 %344
      %v347 = vmul.f32 %v336, %v345
      %349 = vrot.lane.b32.xlu0 %v347, 32
      %v350 = vpop.permute.xlu0 %349
      %v352 = vadd.f32 %v342, %v350
      %v353 = vtanh.pop %v352
      %355 = vrot.lane.b32.xlu0 %v353, 64
      %v356 = vpop.permute.xlu0 %355
      %v358 = vmul.f32 %v336, %v356
      %360 = vrot.lane.b32.xlu0 %v358, 32
      %v361 = vpop.permute.xlu0 %360
      %s363 = scalar_lea.vmem %s234, %s253
      %vm364 = vcmask 254976
      %365 = vst.msk [vmem:[%s363] sm:$0x3] %vm364, %v361
      %s366 = smul.u32 %s17, 2
      %s367 = ssub.s32 1, %s366
      %s368 = sadd.s32 %s252, %s367
      %s369 = smul.u32 %s368, 2
      %s370 = scalar_lea.vmem %s213, %s369
      %v371 = vld [vmem:[%s370] sm:$0x3]
      %v372 = vsel %vm256, %v361, 0
      %374 = vmatprep.subr.mxu0 0.0
      %375 = vmatpush1.msra.mxu0 0.0
      %376 = vmatprep.subr.mxu0 0.0
      %377 = vmatpush1.msra.mxu0 0.0
      %378 = vmatprep.subr.mxu0 0.0
      %379 = vmatpush1.msra.mxu0 0.0
      %380 = vmatprep.subr.mxu0 0.0
      %381 = vmatpush1.msra.mxu0 0.0
      %382 = vmatprep.subr.mxu0 0.0
      %383 = vmatpush1.msra.mxu0 0.0
      %384 = vmatprep.subr.mxu0 0.0
      %385 = vmatpush1.msra.mxu0 0.0
      %386 = vmatprep.subr.mxu0 0.0
      %387 = vmatpush1.msra.mxu0 0.0
      %388 = vmatprep.subr.mxu0 0.0
      %389 = vmatpush1.msra.mxu0 0.0
      %390 = vmatprep.subr.mxu0 0.0
      %391 = vmatpush1.msra.mxu0 0.0
      %392 = vmatprep.subr.mxu0 0.0
      %393 = vmatpush1.msra.mxu0 0.0
      %394 = vmatprep.subr.mxu0 0.0
      %395 = vmatpush1.msra.mxu0 0.0
      %396 = vmatprep.subr.mxu0 0.0
      %397 = vmatpush1.msra.mxu0 0.0
      %398 = vmatprep.subr.mxu0 0.0
      %399 = vmatpush1.msra.mxu0 %v249
      %400 = vmatprep.subr.mxu0 0.0
      %401 = vmatpush1.msra.mxu0 %v248
      %402 = vmatprep.subr.mxu0 0.0
      %403 = vmatpush1.msra.mxu0 %v247
      %404 = vmatprep.subr.mxu0 0.0
      %405 = vmatpush1.msra.mxu0 %v246
      %406 = vmatprep.subr.mxu0 0.0
      %407 = vmatpush2.msra.mxu0 0.0
      %408 = vmatprep.subr.mxu0 0.0
      %409 = vmatpush2.msra.mxu0 0.0
      %410 = vmatprep.subr.mxu0 0.0
      %411 = vmatpush2.msra.mxu0 0.0
      %412 = vmatprep.subr.mxu0 0.0
      %413 = vmatpush2.msra.mxu0 0.0
      %414 = vmatprep.subr.mxu0 0.0
      %415 = vmatpush2.msra.mxu0 0.0
      %416 = vmatprep.subr.mxu0 0.0
      %417 = vmatpush2.msra.mxu0 0.0
      %418 = vmatprep.subr.mxu0 0.0
      %419 = vmatpush2.msra.mxu0 0.0
      %420 = vmatprep.subr.mxu0 0.0
      %421 = vmatpush2.msra.mxu0 0.0
      %422 = vmatprep.subr.mxu0 0.0
      %423 = vmatpush2.msra.mxu0 0.0
      %424 = vmatprep.subr.mxu0 0.0
      %425 = vmatpush2.msra.mxu0 0.0
      %426 = vmatprep.subr.mxu0 0.0
      %427 = vmatpush2.msra.mxu0 0.0
      %428 = vmatprep.subr.mxu0 0.0
      %429 = vmatpush2.msra.mxu0 0.0
      %430 = vmatprep.subr.mxu0 0.0
      %431 = vmatpush2.msra.mxu0 0.0
      %432 = vmatprep.subr.mxu0 0.0
      %433 = vmatpush2.msra.mxu0 0.0
      %434 = vmatprep.subr.mxu0 0.0
      %435 = vmatpush2.msra.mxu0 0.0
      %436 = vmatprep.subr.mxu0 0.0
      %437 = vmatpush2.msra.mxu0 0.0
      %438 = vmatprep.mubr.f32.mxu0 0.0
      %439 = vmatmul.mubr.f32.gmra.mxu0 %v372
      %v440 = vpop.f32.mrf.mxu0
      %v441 = vadd.f32 0.0, %v440
      %v442 = vpop.f32.mrf.mxu0
      %443 = vdwg.mxu0
      %v444 = vadd.f32 %v371, %v441
      %v445 = vxor.u32 %v444, 2147483648
      %v446 = vmul.f32 %v445, 1.442695
      %v447 = vpow.pop %v446
      %v448 = vadd.f32 %v447, 1.0
      %v449 = vrcp.pop %v448
      %v450 = vmul.f32 1.0, %v449
      %v451 = vtanh.pop %v444
      %v452 = vmul.f32 %v450, %v352
      %454 = vrot.lane.b32.xlu0 %v451, 64
      %v455 = vpop.permute.xlu0 %454
      %v457 = vmul.f32 %v450, %v455
      %459 = vrot.lane.b32.xlu0 %v457, 32
      %v460 = vpop.permute.xlu0 %459
      %v462 = vadd.f32 %v452, %v460
      %v463 = vtanh.pop %v462
      %465 = vrot.lane.b32.xlu0 %v463, 64
      %v466 = vpop.permute.xlu0 %465
      %v468 = vmul.f32 %v450, %v466
      %470 = vrot.lane.b32.xlu0 %v468, 32
      %v471 = vpop.permute.xlu0 %470
      %s473 = scalar_lea.vmem %s234, %s369
      %474 = vst.msk [vmem:[%s473] sm:$0x3] %vm364, %v471
      %s475 = smul.u32 %s367, 2
      %s476 = sadd.s32 %s252, %s475
      %s477 = smul.u32 %s476, 2
      %s478 = scalar_lea.vmem %s213, %s477
      %v479 = vld [vmem:[%s478] sm:$0x3]
      %v480 = vsel %vm256, %v471, 0
      %482 = vmatprep.subr.mxu0 0.0
      %483 = vmatpush1.msra.mxu0 0.0
      %484 = vmatprep.subr.mxu0 0.0
      %485 = vmatpush1.msra.mxu0 0.0
      %486 = vmatprep.subr.mxu0 0.0
      %487 = vmatpush1.msra.mxu0 0.0
      %488 = vmatprep.subr.mxu0 0.0
      %489 = vmatpush1.msra.mxu0 0.0
      %490 = vmatprep.subr.mxu0 0.0
      %491 = vmatpush1.msra.mxu0 0.0
      %492 = vmatprep.subr.mxu0 0.0
      %493 = vmatpush1.msra.mxu0 0.0
      %494 = vmatprep.subr.mxu0 0.0
      %495 = vmatpush1.msra.mxu0 0.0
      %496 = vmatprep.subr.mxu0 0.0
      %497 = vmatpush1.msra.mxu0 0.0
      %498 = vmatprep.subr.mxu0 0.0
      %499 = vmatpush1.msra.mxu0 0.0
      %500 = vmatprep.subr.mxu0 0.0
      %501 = vmatpush1.msra.mxu0 0.0
      %502 = vmatprep.subr.mxu0 0.0
      %503 = vmatpush1.msra.mxu0 0.0
      %504 = vmatprep.subr.mxu0 0.0
      %505 = vmatpush1.msra.mxu0 0.0
      %506 = vmatprep.subr.mxu0 0.0
      %507 = vmatpush1.msra.mxu0 %v249
      %508 = vmatprep.subr.mxu0 0.0
      %509 = vmatpush1.msra.mxu0 %v248
      %510 = vmatprep.subr.mxu0 0.0
      %511 = vmatpush1.msra.mxu0 %v247
      %512 = vmatprep.subr.mxu0 0.0
      %513 = vmatpush1.msra.mxu0 %v246
      %514 = vmatprep.subr.mxu0 0.0
      %515 = vmatpush2.msra.mxu0 0.0
      %516 = vmatprep.subr.mxu0 0.0
      %517 = vmatpush2.msra.mxu0 0.0
      %518 = vmatprep.subr.mxu0 0.0
      %519 = vmatpush2.msra.mxu0 0.0
      %520 = vmatprep.subr.mxu0 0.0
      %521 = vmatpush2.msra.mxu0 0.0
      %522 = vmatprep.subr.mxu0 0.0
      %523 = vmatpush2.msra.mxu0 0.0
      %524 = vmatprep.subr.mxu0 0.0
      %525 = vmatpush2.msra.mxu0 0.0
      %526 = vmatprep.subr.mxu0 0.0
      %527 = vmatpush2.msra.mxu0 0.0
      %528 = vmatprep.subr.mxu0 0.0
      %529 = vmatpush2.msra.mxu0 0.0
      %530 = vmatprep.subr.mxu0 0.0
      %531 = vmatpush2.msra.mxu0 0.0
      %532 = vmatprep.subr.mxu0 0.0
      %533 = vmatpush2.msra.mxu0 0.0
      %534 = vmatprep.subr.mxu0 0.0
      %535 = vmatpush2.msra.mxu0 0.0
      %536 = vmatprep.subr.mxu0 0.0
      %537 = vmatpush2.msra.mxu0 0.0
      %538 = vmatprep.subr.mxu0 0.0
      %539 = vmatpush2.msra.mxu0 0.0
      %540 = vmatprep.subr.mxu0 0.0
      %541 = vmatpush2.msra.mxu0 0.0
      %542 = vmatprep.subr.mxu0 0.0
      %543 = vmatpush2.msra.mxu0 0.0
      %544 = vmatprep.subr.mxu0 0.0
      %545 = vmatpush2.msra.mxu0 0.0
      %546 = vmatprep.mubr.f32.mxu0 0.0
      %547 = vmatmul.mubr.f32.gmra.mxu0 %v480
      %v548 = vpop.f32.mrf.mxu0
      %v549 = vadd.f32 0.0, %v548
      %v550 = vpop.f32.mrf.mxu0
      %551 = vdwg.mxu0
      %v552 = vadd.f32 %v479, %v549
      %v553 = vxor.u32 %v552, 2147483648
      %v554 = vmul.f32 %v553, 1.442695
      %v555 = vpow.pop %v554
      %v556 = vadd.f32 %v555, 1.0
      %v557 = vrcp.pop %v556
      %v558 = vmul.f32 1.0, %v557
      %v559 = vtanh.pop %v552
      %v560 = vmul.f32 %v558, %v462
      %562 = vrot.lane.b32.xlu0 %v559, 64
      %v563 = vpop.permute.xlu0 %562
      %v565 = vmul.f32 %v558, %v563
      %567 = vrot.lane.b32.xlu0 %v565, 32
      %v568 = vpop.permute.xlu0 %567
      %v570 = vadd.f32 %v560, %v568
      %v571 = vtanh.pop %v570
      %573 = vrot.lane.b32.xlu0 %v571, 64
      %v574 = vpop.permute.xlu0 %573
      %v576 = vmul.f32 %v558, %v574
      %578 = vrot.lane.b32.xlu0 %v576, 32
      %v579 = vpop.permute.xlu0 %578
      %s581 = scalar_lea.vmem %s234, %s477
      %582 = vst.msk [vmem:[%s581] sm:$0x3] %vm364, %v579
      %s583 = smul.u32 %s367, 3
      %s584 = sadd.s32 %s252, %s583
      %s585 = smul.u32 %s584, 2
      %s586 = scalar_lea.vmem %s213, %s585
      %v587 = vld [vmem:[%s586] sm:$0x3]
      %v588 = vsel %vm256, %v579, 0
      %590 = vmatprep.subr.mxu0 0.0
      %591 = vmatpush1.msra.mxu0 0.0
      %592 = vmatprep.subr.mxu0 0.0
      %593 = vmatpush1.msra.mxu0 0.0
      %594 = vmatprep.subr.mxu0 0.0
      %595 = vmatpush1.msra.mxu0 0.0
      %596 = vmatprep.subr.mxu0 0.0
      %597 = vmatpush1.msra.mxu0 0.0
      %598 = vmatprep.subr.mxu0 0.0
      %599 = vmatpush1.msra.mxu0 0.0
      %600 = vmatprep.subr.mxu0 0.0
      %601 = vmatpush1.msra.mxu0 0.0
      %602 = vmatprep.subr.mxu0 0.0
      %603 = vmatpush1.msra.mxu0 0.0
      %604 = vmatprep.subr.mxu0 0.0
      %605 = vmatpush1.msra.mxu0 0.0
      %606 = vmatprep.subr.mxu0 0.0
      %607 = vmatpush1.msra.mxu0 0.0
      %608 = vmatprep.subr.mxu0 0.0
      %609 = vmatpush1.msra.mxu0 0.0
      %610 = vmatprep.subr.mxu0 0.0
      %611 = vmatpush1.msra.mxu0 0.0
      %612 = vmatprep.subr.mxu0 0.0
      %613 = vmatpush1.msra.mxu0 0.0
      %614 = vmatprep.subr.mxu0 0.0
      %615 = vmatpush1.msra.mxu0 %v249
      %616 = vmatprep.subr.mxu0 0.0
      %617 = vmatpush1.msra.mxu0 %v248
      %618 = vmatprep.subr.mxu0 0.0
      %619 = vmatpush1.msra.mxu0 %v247
      %620 = vmatprep.subr.mxu0 0.0
      %621 = vmatpush1.msra.mxu0 %v246
      %622 = vmatprep.subr.mxu0 0.0
      %623 = vmatpush2.msra.mxu0 0.0
      %624 = vmatprep.subr.mxu0 0.0
      %625 = vmatpush2.msra.mxu0 0.0
      %626 = vmatprep.subr.mxu0 0.0
      %627 = vmatpush2.msra.mxu0 0.0
      %628 = vmatprep.subr.mxu0 0.0
      %629 = vmatpush2.msra.mxu0 0.0
      %630 = vmatprep.subr.mxu0 0.0
      %631 = vmatpush2.msra.mxu0 0.0
      %632 = vmatprep.subr.mxu0 0.0
      %633 = vmatpush2.msra.mxu0 0.0
      %634 = vmatprep.subr.mxu0 0.0
      %635 = vmatpush2.msra.mxu0 0.0
      %636 = vmatprep.subr.mxu0 0.0
      %637 = vmatpush2.msra.mxu0 0.0
      %638 = vmatprep.subr.mxu0 0.0
      %639 = vmatpush2.msra.mxu0 0.0
      %640 = vmatprep.subr.mxu0 0.0
      %641 = vmatpush2.msra.mxu0 0.0
      %642 = vmatprep.subr.mxu0 0.0
      %643 = vmatpush2.msra.mxu0 0.0
      %644 = vmatprep.subr.mxu0 0.0
      %645 = vmatpush2.msra.mxu0 0.0
      %646 = vmatprep.subr.mxu0 0.0
      %647 = vmatpush2.msra.mxu0 0.0
      %648 = vmatprep.subr.mxu0 0.0
      %649 = vmatpush2.msra.mxu0 0.0
      %650 = vmatprep.subr.mxu0 0.0
      %651 = vmatpush2.msra.mxu0 0.0
      %652 = vmatprep.subr.mxu0 0.0
      %653 = vmatpush2.msra.mxu0 0.0
      %654 = vmatprep.mubr.f32.mxu0 0.0
      %655 = vmatmul.mubr.f32.gmra.mxu0 %v588
      %v656 = vpop.f32.mrf.mxu0
      %v657 = vadd.f32 0.0, %v656
      %v658 = vpop.f32.mrf.mxu0
      %659 = vdwg.mxu0
      %v660 = vadd.f32 %v587, %v657
      %v661 = vxor.u32 %v660, 2147483648
      %v662 = vmul.f32 %v661, 1.442695
      %v663 = vpow.pop %v662
      %v664 = vadd.f32 %v663, 1.0
      %v665 = vrcp.pop %v664
      %v666 = vmul.f32 1.0, %v665
      %v667 = vtanh.pop %v660
      %v668 = vmul.f32 %v666, %v570
      %670 = vrot.lane.b32.xlu0 %v667, 64
      %v671 = vpop.permute.xlu0 %670
      %v673 = vmul.f32 %v666, %v671
      %675 = vrot.lane.b32.xlu0 %v673, 32
      %v676 = vpop.permute.xlu0 %675
      %v678 = vadd.f32 %v668, %v676
      %v679 = vtanh.pop %v678
      %681 = vrot.lane.b32.xlu0 %v679, 64
      %v682 = vpop.permute.xlu0 %681
      %v684 = vmul.f32 %v666, %v682
      %686 = vrot.lane.b32.xlu0 %v684, 32
      %v687 = vpop.permute.xlu0 %686
      %s689 = scalar_lea.vmem %s234, %s585
      %690 = vst.msk [vmem:[%s689] sm:$0x3] %vm364, %v687
      %s691 = smul.u32 %s367, 4
      %s692 = sadd.s32 %s252, %s691
      %s693 = smul.u32 %s692, 2
      %s694 = scalar_lea.vmem %s213, %s693
      %v695 = vld [vmem:[%s694] sm:$0x3]
      %v696 = vsel %vm256, %v687, 0
      %698 = vmatprep.subr.mxu0 0.0
      %699 = vmatpush1.msra.mxu0 0.0
      %700 = vmatprep.subr.mxu0 0.0
      %701 = vmatpush1.msra.mxu0 0.0
      %702 = vmatprep.subr.mxu0 0.0
      %703 = vmatpush1.msra.mxu0 0.0
      %704 = vmatprep.subr.mxu0 0.0
      %705 = vmatpush1.msra.mxu0 0.0
      %706 = vmatprep.subr.mxu0 0.0
      %707 = vmatpush1.msra.mxu0 0.0
      %708 = vmatprep.subr.mxu0 0.0
      %709 = vmatpush1.msra.mxu0 0.0
      %710 = vmatprep.subr.mxu0 0.0
      %711 = vmatpush1.msra.mxu0 0.0
      %712 = vmatprep.subr.mxu0 0.0
      %713 = vmatpush1.msra.mxu0 0.0
      %714 = vmatprep.subr.mxu0 0.0
      %715 = vmatpush1.msra.mxu0 0.0
      %716 = vmatprep.subr.mxu0 0.0
      %717 = vmatpush1.msra.mxu0 0.0
      %718 = vmatprep.subr.mxu0 0.0
      %719 = vmatpush1.msra.mxu0 0.0
      %720 = vmatprep.subr.mxu0 0.0
      %721 = vmatpush1.msra.mxu0 0.0
      %722 = vmatprep.subr.mxu0 0.0
      %723 = vmatpush1.msra.mxu0 %v249
      %724 = vmatprep.subr.mxu0 0.0
      %725 = vmatpush1.msra.mxu0 %v248
      %726 = vmatprep.subr.mxu0 0.0
      %727 = vmatpush1.msra.mxu0 %v247
      %728 = vmatprep.subr.mxu0 0.0
      %729 = vmatpush1.msra.mxu0 %v246
      %730 = vmatprep.subr.mxu0 0.0
      %731 = vmatpush2.msra.mxu0 0.0
      %732 = vmatprep.subr.mxu0 0.0
      %733 = vmatpush2.msra.mxu0 0.0
      %734 = vmatprep.subr.mxu0 0.0
      %735 = vmatpush2.msra.mxu0 0.0
      %736 = vmatprep.subr.mxu0 0.0
      %737 = vmatpush2.msra.mxu0 0.0
      %738 = vmatprep.subr.mxu0 0.0
      %739 = vmatpush2.msra.mxu0 0.0
      %740 = vmatprep.subr.mxu0 0.0
      %741 = vmatpush2.msra.mxu0 0.0
      %742 = vmatprep.subr.mxu0 0.0
      %743 = vmatpush2.msra.mxu0 0.0
      %744 = vmatprep.subr.mxu0 0.0
      %745 = vmatpush2.msra.mxu0 0.0
      %746 = vmatprep.subr.mxu0 0.0
      %747 = vmatpush2.msra.mxu0 0.0
      %748 = vmatprep.subr.mxu0 0.0
      %749 = vmatpush2.msra.mxu0 0.0
      %750 = vmatprep.subr.mxu0 0.0
      %751 = vmatpush2.msra.mxu0 0.0
      %752 = vmatprep.subr.mxu0 0.0
      %753 = vmatpush2.msra.mxu0 0.0
      %754 = vmatprep.subr.mxu0 0.0
      %755 = vmatpush2.msra.mxu0 0.0
      %756 = vmatprep.subr.mxu0 0.0
      %757 = vmatpush2.msra.mxu0 0.0
      %758 = vmatprep.subr.mxu0 0.0
      %759 = vmatpush2.msra.mxu0 0.0
      %760 = vmatprep.subr.mxu0 0.0
      %761 = vmatpush2.msra.mxu0 0.0
      %762 = vmatprep.mubr.f32.mxu0 0.0
      %763 = vmatmul.mubr.f32.gmra.mxu0 %v696
      %v764 = vpop.f32.mrf.mxu0
      %v765 = vadd.f32 0.0, %v764
      %v766 = vpop.f32.mrf.mxu0
      %767 = vdwg.mxu0
      %v768 = vadd.f32 %v695, %v765
      %v769 = vxor.u32 %v768, 2147483648
      %v770 = vmul.f32 %v769, 1.442695
      %v771 = vpow.pop %v770
      %v772 = vadd.f32 %v771, 1.0
      %v773 = vrcp.pop %v772
      %v774 = vmul.f32 1.0, %v773
      %v775 = vtanh.pop %v768
      %v776 = vmul.f32 %v774, %v678
      %778 = vrot.lane.b32.xlu0 %v775, 64
      %v779 = vpop.permute.xlu0 %778
      %v781 = vmul.f32 %v774, %v779
      %783 = vrot.lane.b32.xlu0 %v781, 32
      %v784 = vpop.permute.xlu0 %783
      %v786 = vadd.f32 %v776, %v784
      %v787 = vtanh.pop %v786
      %789 = vrot.lane.b32.xlu0 %v787, 64
      %v790 = vpop.permute.xlu0 %789
      %v792 = vmul.f32 %v774, %v790
      %794 = vrot.lane.b32.xlu0 %v792, 32
      %v795 = vpop.permute.xlu0 %794
      %s797 = scalar_lea.vmem %s234, %s693
      %798 = vst.msk [vmem:[%s797] sm:$0x3] %vm364, %v795
      %s799 = smul.u32 %s367, 5
      %s800 = sadd.s32 %s252, %s799
      %s801 = smul.u32 %s800, 2
      %s802 = scalar_lea.vmem %s213, %s801
      %v803 = vld [vmem:[%s802] sm:$0x3]
      %v804 = vsel %vm256, %v795, 0
      %806 = vmatprep.subr.mxu0 0.0
      %807 = vmatpush1.msra.mxu0 0.0
      %808 = vmatprep.subr.mxu0 0.0
      %809 = vmatpush1.msra.mxu0 0.0
      %810 = vmatprep.subr.mxu0 0.0
      %811 = vmatpush1.msra.mxu0 0.0
      %812 = vmatprep.subr.mxu0 0.0
      %813 = vmatpush1.msra.mxu0 0.0
      %814 = vmatprep.subr.mxu0 0.0
      %815 = vmatpush1.msra.mxu0 0.0
      %816 = vmatprep.subr.mxu0 0.0
      %817 = vmatpush1.msra.mxu0 0.0
      %818 = vmatprep.subr.mxu0 0.0
      %819 = vmatpush1.msra.mxu0 0.0
      %820 = vmatprep.subr.mxu0 0.0
      %821 = vmatpush1.msra.mxu0 0.0
      %822 = vmatprep.subr.mxu0 0.0
      %823 = vmatpush1.msra.mxu0 0.0
      %824 = vmatprep.subr.mxu0 0.0
      %825 = vmatpush1.msra.mxu0 0.0
      %826 = vmatprep.subr.mxu0 0.0
      %827 = vmatpush1.msra.mxu0 0.0
      %828 = vmatprep.subr.mxu0 0.0
      %829 = vmatpush1.msra.mxu0 0.0
      %830 = vmatprep.subr.mxu0 0.0
      %831 = vmatpush1.msra.mxu0 %v249
      %832 = vmatprep.subr.mxu0 0.0
      %833 = vmatpush1.msra.mxu0 %v248
      %834 = vmatprep.subr.mxu0 0.0
      %835 = vmatpush1.msra.mxu0 %v247
      %836 = vmatprep.subr.mxu0 0.0
      %837 = vmatpush1.msra.mxu0 %v246
      %838 = vmatprep.subr.mxu0 0.0
      %839 = vmatpush2.msra.mxu0 0.0
      %840 = vmatprep.subr.mxu0 0.0
      %841 = vmatpush2.msra.mxu0 0.0
      %842 = vmatprep.subr.mxu0 0.0
      %843 = vmatpush2.msra.mxu0 0.0
      %844 = vmatprep.subr.mxu0 0.0
      %845 = vmatpush2.msra.mxu0 0.0
      %846 = vmatprep.subr.mxu0 0.0
      %847 = vmatpush2.msra.mxu0 0.0
      %848 = vmatprep.subr.mxu0 0.0
      %849 = vmatpush2.msra.mxu0 0.0
      %850 = vmatprep.subr.mxu0 0.0
      %851 = vmatpush2.msra.mxu0 0.0
      %852 = vmatprep.subr.mxu0 0.0
      %853 = vmatpush2.msra.mxu0 0.0
      %854 = vmatprep.subr.mxu0 0.0
      %855 = vmatpush2.msra.mxu0 0.0
      %856 = vmatprep.subr.mxu0 0.0
      %857 = vmatpush2.msra.mxu0 0.0
      %858 = vmatprep.subr.mxu0 0.0
      %859 = vmatpush2.msra.mxu0 0.0
      %860 = vmatprep.subr.mxu0 0.0
      %861 = vmatpush2.msra.mxu0 0.0
      %862 = vmatprep.subr.mxu0 0.0
      %863 = vmatpush2.msra.mxu0 0.0
      %864 = vmatprep.subr.mxu0 0.0
      %865 = vmatpush2.msra.mxu0 0.0
      %866 = vmatprep.subr.mxu0 0.0
      %867 = vmatpush2.msra.mxu0 0.0
      %868 = vmatprep.subr.mxu0 0.0
      %869 = vmatpush2.msra.mxu0 0.0
      %870 = vmatprep.mubr.f32.mxu0 0.0
      %871 = vmatmul.mubr.f32.gmra.mxu0 %v804
      %v872 = vpop.f32.mrf.mxu0
      %v873 = vadd.f32 0.0, %v872
      %v874 = vpop.f32.mrf.mxu0
      %875 = vdwg.mxu0
      %v876 = vadd.f32 %v803, %v873
      %v877 = vxor.u32 %v876, 2147483648
      %v878 = vmul.f32 %v877, 1.442695
      %v879 = vpow.pop %v878
      %v880 = vadd.f32 %v879, 1.0
      %v881 = vrcp.pop %v880
      %v882 = vmul.f32 1.0, %v881
      %v883 = vtanh.pop %v876
      %v884 = vmul.f32 %v882, %v786
      %886 = vrot.lane.b32.xlu0 %v883, 64
      %v887 = vpop.permute.xlu0 %886
      %v889 = vmul.f32 %v882, %v887
      %891 = vrot.lane.b32.xlu0 %v889, 32
      %v892 = vpop.permute.xlu0 %891
      %v894 = vadd.f32 %v884, %v892
      %v895 = vtanh.pop %v894
      %897 = vrot.lane.b32.xlu0 %v895, 64
      %v898 = vpop.permute.xlu0 %897
      %v900 = vmul.f32 %v882, %v898
      %902 = vrot.lane.b32.xlu0 %v900, 32
      %v903 = vpop.permute.xlu0 %902
      %s905 = scalar_lea.vmem %s234, %s801
      %906 = vst.msk [vmem:[%s905] sm:$0x3] %vm364, %v903
      %s907 = smul.u32 %s367, 6
      %s908 = sadd.s32 %s252, %s907
      %s909 = smul.u32 %s908, 2
      %s910 = scalar_lea.vmem %s213, %s909
      %v911 = vld [vmem:[%s910] sm:$0x3]
      %v912 = vsel %vm256, %v903, 0
      %914 = vmatprep.subr.mxu0 0.0
      %915 = vmatpush1.msra.mxu0 0.0
      %916 = vmatprep.subr.mxu0 0.0
      %917 = vmatpush1.msra.mxu0 0.0
      %918 = vmatprep.subr.mxu0 0.0
      %919 = vmatpush1.msra.mxu0 0.0
      %920 = vmatprep.subr.mxu0 0.0
      %921 = vmatpush1.msra.mxu0 0.0
      %922 = vmatprep.subr.mxu0 0.0
      %923 = vmatpush1.msra.mxu0 0.0
      %924 = vmatprep.subr.mxu0 0.0
      %925 = vmatpush1.msra.mxu0 0.0
      %926 = vmatprep.subr.mxu0 0.0
      %927 = vmatpush1.msra.mxu0 0.0
      %928 = vmatprep.subr.mxu0 0.0
      %929 = vmatpush1.msra.mxu0 0.0
      %930 = vmatprep.subr.mxu0 0.0
      %931 = vmatpush1.msra.mxu0 0.0
      %932 = vmatprep.subr.mxu0 0.0
      %933 = vmatpush1.msra.mxu0 0.0
      %934 = vmatprep.subr.mxu0 0.0
      %935 = vmatpush1.msra.mxu0 0.0
      %936 = vmatprep.subr.mxu0 0.0
      %937 = vmatpush1.msra.mxu0 0.0
      %938 = vmatprep.subr.mxu0 0.0
      %939 = vmatpush1.msra.mxu0 %v249
      %940 = vmatprep.subr.mxu0 0.0
      %941 = vmatpush1.msra.mxu0 %v248
      %942 = vmatprep.subr.mxu0 0.0
      %943 = vmatpush1.msra.mxu0 %v247
      %944 = vmatprep.subr.mxu0 0.0
      %945 = vmatpush1.msra.mxu0 %v246
      %946 = vmatprep.subr.mxu0 0.0
      %947 = vmatpush2.msra.mxu0 0.0
      %948 = vmatprep.subr.mxu0 0.0
      %949 = vmatpush2.msra.mxu0 0.0
      %950 = vmatprep.subr.mxu0 0.0
      %951 = vmatpush2.msra.mxu0 0.0
      %952 = vmatprep.subr.mxu0 0.0
      %953 = vmatpush2.msra.mxu0 0.0
      %954 = vmatprep.subr.mxu0 0.0
      %955 = vmatpush2.msra.mxu0 0.0
      %956 = vmatprep.subr.mxu0 0.0
      %957 = vmatpush2.msra.mxu0 0.0
      %958 = vmatprep.subr.mxu0 0.0
      %959 = vmatpush2.msra.mxu0 0.0
      %960 = vmatprep.subr.mxu0 0.0
      %961 = vmatpush2.msra.mxu0 0.0
      %962 = vmatprep.subr.mxu0 0.0
      %963 = vmatpush2.msra.mxu0 0.0
      %964 = vmatprep.subr.mxu0 0.0
      %965 = vmatpush2.msra.mxu0 0.0
      %966 = vmatprep.subr.mxu0 0.0
      %967 = vmatpush2.msra.mxu0 0.0
      %968 = vmatprep.subr.mxu0 0.0
      %969 = vmatpush2.msra.mxu0 0.0
      %970 = vmatprep.subr.mxu0 0.0
      %971 = vmatpush2.msra.mxu0 0.0
      %972 = vmatprep.subr.mxu0 0.0
      %973 = vmatpush2.msra.mxu0 0.0
      %974 = vmatprep.subr.mxu0 0.0
      %975 = vmatpush2.msra.mxu0 0.0
      %976 = vmatprep.subr.mxu0 0.0
      %977 = vmatpush2.msra.mxu0 0.0
      %978 = vmatprep.mubr.f32.mxu0 0.0
      %979 = vmatmul.mubr.f32.gmra.mxu0 %v912
      %v980 = vpop.f32.mrf.mxu0
      %v981 = vadd.f32 0.0, %v980
      %v982 = vpop.f32.mrf.mxu0
      %983 = vdwg.mxu0
      %v984 = vadd.f32 %v911, %v981
      %v985 = vxor.u32 %v984, 2147483648
      %v986 = vmul.f32 %v985, 1.442695
      %v987 = vpow.pop %v986
      %v988 = vadd.f32 %v987, 1.0
      %v989 = vrcp.pop %v988
      %v990 = vmul.f32 1.0, %v989
      %v991 = vtanh.pop %v984
      %v992 = vmul.f32 %v990, %v894
      %994 = vrot.lane.b32.xlu0 %v991, 64
      %v995 = vpop.permute.xlu0 %994
      %v997 = vmul.f32 %v990, %v995
      %999 = vrot.lane.b32.xlu0 %v997, 32
      %v1000 = vpop.permute.xlu0 %999
      %v1002 = vadd.f32 %v992, %v1000
      %v1003 = vtanh.pop %v1002
      %1005 = vrot.lane.b32.xlu0 %v1003, 64
      %v1006 = vpop.permute.xlu0 %1005
      %v1008 = vmul.f32 %v990, %v1006
      %1010 = vrot.lane.b32.xlu0 %v1008, 32
      %v1011 = vpop.permute.xlu0 %1010
      %s1013 = scalar_lea.vmem %s234, %s909
      %1014 = vst.msk [vmem:[%s1013] sm:$0x3] %vm364, %v1011
      %s1015 = smul.u32 %s367, 7
      %s1016 = sadd.s32 %s252, %s1015
      %s1017 = smul.u32 %s1016, 2
      %s1018 = scalar_lea.vmem %s213, %s1017
      %v1019 = vld [vmem:[%s1018] sm:$0x3]
      %v1020 = vsel %vm256, %v1011, 0
      %1022 = vmatprep.subr.mxu0 0.0
      %1023 = vmatpush1.msra.mxu0 0.0
      %1024 = vmatprep.subr.mxu0 0.0
      %1025 = vmatpush1.msra.mxu0 0.0
      %1026 = vmatprep.subr.mxu0 0.0
      %1027 = vmatpush1.msra.mxu0 0.0
      %1028 = vmatprep.subr.mxu0 0.0
      %1029 = vmatpush1.msra.mxu0 0.0
      %1030 = vmatprep.subr.mxu0 0.0
      %1031 = vmatpush1.msra.mxu0 0.0
      %1032 = vmatprep.subr.mxu0 0.0
      %1033 = vmatpush1.msra.mxu0 0.0
      %1034 = vmatprep.subr.mxu0 0.0
      %1035 = vmatpush1.msra.mxu0 0.0
      %1036 = vmatprep.subr.mxu0 0.0
      %1037 = vmatpush1.msra.mxu0 0.0
      %1038 = vmatprep.subr.mxu0 0.0
      %1039 = vmatpush1.msra.mxu0 0.0
      %1040 = vmatprep.subr.mxu0 0.0
      %1041 = vmatpush1.msra.mxu0 0.0
      %1042 = vmatprep.subr.mxu0 0.0
      %1043 = vmatpush1.msra.mxu0 0.0
      %1044 = vmatprep.subr.mxu0 0.0
      %1045 = vmatpush1.msra.mxu0 0.0
      %1046 = vmatprep.subr.mxu0 0.0
      %1047 = vmatpush1.msra.mxu0 %v249
      %1048 = vmatprep.subr.mxu0 0.0
      %1049 = vmatpush1.msra.mxu0 %v248
      %1050 = vmatprep.subr.mxu0 0.0
      %1051 = vmatpush1.msra.mxu0 %v247
      %1052 = vmatprep.subr.mxu0 0.0
      %1053 = vmatpush1.msra.mxu0 %v246
      %1054 = vmatprep.subr.mxu0 0.0
      %1055 = vmatpush2.msra.mxu0 0.0
      %1056 = vmatprep.subr.mxu0 0.0
      %1057 = vmatpush2.msra.mxu0 0.0
      %1058 = vmatprep.subr.mxu0 0.0
      %1059 = vmatpush2.msra.mxu0 0.0
      %1060 = vmatprep.subr.mxu0 0.0
      %1061 = vmatpush2.msra.mxu0 0.0
      %1062 = vmatprep.subr.mxu0 0.0
      %1063 = vmatpush2.msra.mxu0 0.0
      %1064 = vmatprep.subr.mxu0 0.0
      %1065 = vmatpush2.msra.mxu0 0.0
      %1066 = vmatprep.subr.mxu0 0.0
      %1067 = vmatpush2.msra.mxu0 0.0
      %1068 = vmatprep.subr.mxu0 0.0
      %1069 = vmatpush2.msra.mxu0 0.0
      %1070 = vmatprep.subr.mxu0 0.0
      %1071 = vmatpush2.msra.mxu0 0.0
      %1072 = vmatprep.subr.mxu0 0.0
      %1073 = vmatpush2.msra.mxu0 0.0
      %1074 = vmatprep.subr.mxu0 0.0
      %1075 = vmatpush2.msra.mxu0 0.0
      %1076 = vmatprep.subr.mxu0 0.0
      %1077 = vmatpush2.msra.mxu0 0.0
      %1078 = vmatprep.subr.mxu0 0.0
      %1079 = vmatpush2.msra.mxu0 0.0
      %1080 = vmatprep.subr.mxu0 0.0
      %1081 = vmatpush2.msra.mxu0 0.0
      %1082 = vmatprep.subr.mxu0 0.0
      %1083 = vmatpush2.msra.mxu0 0.0
      %1084 = vmatprep.subr.mxu0 0.0
      %1085 = vmatpush2.msra.mxu0 0.0
      %1086 = vmatprep.mubr.f32.mxu0 0.0
      %1087 = vmatmul.mubr.f32.gmra.mxu0 %v1020
      %v1088 = vpop.f32.mrf.mxu0
      %v1089 = vadd.f32 0.0, %v1088
      %v1090 = vpop.f32.mrf.mxu0
      %1091 = vdwg.mxu0
      %v1092 = vadd.f32 %v1019, %v1089
      %v1093 = vxor.u32 %v1092, 2147483648
      %v1094 = vmul.f32 %v1093, 1.442695
      %v1095 = vpow.pop %v1094
      %v1096 = vadd.f32 %v1095, 1.0
      %v1097 = vrcp.pop %v1096
      %v1098 = vmul.f32 1.0, %v1097
      %v1099 = vtanh.pop %v1092
      %v1100 = vmul.f32 %v1098, %v1002
      %1102 = vrot.lane.b32.xlu0 %v1099, 64
      %v1103 = vpop.permute.xlu0 %1102
      %v1105 = vmul.f32 %v1098, %v1103
      %1107 = vrot.lane.b32.xlu0 %v1105, 32
      %v1108 = vpop.permute.xlu0 %1107
      %v1110 = vadd.f32 %v1100, %v1108
      %v1111 = vtanh.pop %v1110
      %1113 = vrot.lane.b32.xlu0 %v1111, 64
      %v1114 = vpop.permute.xlu0 %1113
      %v1116 = vmul.f32 %v1098, %v1114
      %1118 = vrot.lane.b32.xlu0 %v1116, 32
      %v1119 = vpop.permute.xlu0 %1118
      %s1121 = scalar_lea.vmem %s234, %s1017
      %1122 = vst.msk [vmem:[%s1121] sm:$0x3] %vm364, %v1119
      %1123 = vst.msk [vmem:[#allocation2] sm:$0x3] %vm364, %v1119
      %1125 = vrot.lane.b32.xlu0 %v1110, 96
      %v1126 = vpop.permute.xlu0 %1125
      %1128 = vst.msk [vmem:[#allocation3] sm:$0x3] %vm364, %v1126
      %s1129 = smul.u32 %s17, 2
      %s1130 = ssub.s32 1, %s1129
      %s1131 = smul.u32 %s1130, %s18
      %s1132 = smul.u32 8, %s1131
      %p1133 = scmp.lt.s32.totalorder %s17, 1
      %s1134 = scalar_select %p1133, %s17, 1
      %p1135 = scmp.lt.s32.totalorder %s1132, 7
      %s1136 = scalar_select %p1135, %s1132, 7
      %s1137 = smul.addr %s1134, 8
      %s1138 = sadd.s32 %s1136, %s1137
      %s1139 = smul.addr %s1138, 2
      %s1140 = scalar_lea.vmem %s2, %s1139
      // Predicated region
      $region33: #{lstm_forward.2} parent=27 // pred_check
        %p1141 = pneg %p111
      $region34: #{lstm_forward.2} parent=27 // pred_check_branch
        %1143 = sbr.rel (%p1141) target = $region36
      $region35: #{lstm_forward.2} parent=27 // pred_region
        %s1144 = smul.u32 %s17, 2
        %s1145 = ssub.s32 1, %s1144
        %s1146 = smul.u32 %s1145, %s18
        %s1147 = smul.u32 8, %s1146
      $region36: #{lstm_forward.2} parent=27 // pred_fallthru
        _
    $region28: #{lstm_forward.2} parent=5 // pred_fallthru
      _
    %p1148 = scmp.le.s32.totalorder 2, %s8
    // Predicated region
    $region37: #{lstm_forward.2} parent=5 // pred_check
      %p1149 = pneg %p1148
    $region38: #{lstm_forward.2} parent=5 // pred_check_branch
      %1151 = sbr.rel (%p1149) target = $region40
    $region39: #{lstm_forward.2} parent=5 // pred_region
      %s1152 = ssub.s32 %s8, 2
      // Predicated region
      $region41: #{lstm_forward.2} parent=39 // pred_check
        %p1153 = pneg %p117
      $region42: #{lstm_forward.2} parent=39 // pred_check_branch
        %1155 = sbr.rel (%p1153) target = $region44
      $region43: #{lstm_forward.2} parent=39 // pred_region
        %s1156 = smul.u32 %s19, 2
        %s1157 = ssub.s32 1, %s1156
        %s1158 = smul.u32 %s1157, %s20
        %s1159 = smul.u32 8, %s1158
        %p1160 = scmp.lt.s32.totalorder %s19, 1
        %s1161 = scalar_select %p1160, %s19, 1
        %p1162 = scmp.lt.s32.totalorder %s1159, 7
        %s1163 = scalar_select %p1162, %s1159, 7
        %s1164 = smul.addr %s1161, 8
        %s1165 = sadd.s32 %s1163, %s1164
        %s1166 = smul.addr %s1165, 2
        %s1167 = scalar_lea.vmem %s2, %s1166
      $region44: #{lstm_forward.2} parent=39 // pred_fallthru
        _
    $region40: #{lstm_forward.2} parent=5 // pred_fallthru
      _
  $region6: #{lstm_forward.2} parent=0 // loop_footer
    %s12 = sadd.s32 1, %s8
  $region7: #{lstm_forward.2} parent=0 // loop_footer_branch
    %7 = sbr.rel target = $region3
  $region8: #{lstm_forward.2} parent=0 // loop_exit
    _

</llo_original>
